<compile_context>
chip_gen: v6e
topology: v6e:2x2x1
jax: 0.10.0
libtpu: 0.0.40
codegen_flags: <defaults>
</compile_context>

<pallas_src>
import jax
import jax.numpy as jnp
from jax.experimental import pallas as pl
from jax.experimental.pallas import tpu as pltpu


def _round_up(x, m):
    return (x + m - 1) // m * m


def decoder_kernel(emb_g_ref, enc_ref, e_enc_ref, h0_ref, c0_ref,
                   we_h_ref, w_ctx_h_ref, w_out_ref, b_out_ref,
                   out_ref):
    T = emb_g_ref.shape[0]
    H = h0_ref.shape[-1]

    # everything is VMEM-resident for the whole decode
    enc = enc_ref[...]          # (S, Np, 2H)
    e_enc = e_enc_ref[...]      # (S, Np, 1)   precomputed enc-energy (+ bias)
    we_h = we_h_ref[...]        # (1, H)
    w_ctx_h = w_ctx_h_ref[...]  # (3H, 4H)     fused [context | hidden] -> gates
    w_out = w_out_ref[...]      # (H, O+H)     [fc_w.T | I_H]
    b_out = b_out_ref[...]      # (1, O+H)     [fc_b   | 0]

    def step(t, carry):
        h, c = carry                                             # (Np, H) each

        # ---- attention energy: relu(h·We_h + e_enc); softmax over seq axis ----
        e_h = jnp.sum(h * we_h, axis=-1, keepdims=True)          # (Np, 1)
        energy = jnp.maximum(e_h[None, :, :] + e_enc, 0.0)       # (S, Np, 1)
        m = jnp.max(energy, axis=0, keepdims=True)
        p = jnp.exp(energy - m)
        att = p / jnp.sum(p, axis=0, keepdims=True)              # exact softmax

        # ---- context_vector = einsum('snk,snl->nl', att, enc) ----
        context = jnp.sum(att * enc, axis=0)                     # (Np, 2H)

        # ---- LSTM gates: fused MXU matmul + precomputed embedding/bias part ----
        x_cat = jnp.concatenate([context, h], axis=-1)           # (Np, 3H)
        gates = (jnp.dot(x_cat, w_ctx_h, preferred_element_type=jnp.float32)
                 + emb_g_ref[t])                                 # (Np, 4H)

        i_g = jax.nn.sigmoid(gates[:, 0 * H:1 * H])
        f_g = jax.nn.sigmoid(gates[:, 1 * H:2 * H])
        g_g = jnp.tanh(gates[:, 2 * H:3 * H])
        o_g = jax.nn.sigmoid(gates[:, 3 * H:4 * H])
        c_new = f_g * c + i_g * g_g
        h_new = o_g * jnp.tanh(c_new)

        # ---- [pred | h] via augmented FC matmul, append c -> 128-lane slab ----
        po_h = (jnp.dot(h_new, w_out, preferred_element_type=jnp.float32)
                + b_out)                                         # (Np, O+H)
        packed = jnp.concatenate([po_h, c_new], axis=-1)         # (Np, O+2H)
        out_ref[pl.ds(t, 1)] = packed[None]

        return (h_new, c_new)

    jax.lax.fori_loop(0, T, step, (h0_ref[...], c0_ref[...]), unroll=True)


def init_params(key, input_size, embedding_size, hidden_size, output_size):
    ks = jax.random.split(key, 9)
    s = 0.05
    params = {
        "embedding": jax.random.normal(ks[0], (input_size, embedding_size), jnp.float32),
        "energy_w": s * jax.random.normal(ks[1], (1, 3 * hidden_size), jnp.float32),
        "energy_b": s * jax.random.normal(ks[2], (1,), jnp.float32),
        "w_ih": s * jax.random.normal(ks[3], (4 * hidden_size,
                                              2 * hidden_size + embedding_size), jnp.float32),
        "b_ih": s * jax.random.normal(ks[4], (4 * hidden_size,), jnp.float32),
        "w_hh": s * jax.random.normal(ks[5], (4 * hidden_size, hidden_size), jnp.float32),
        "b_hh": s * jax.random.normal(ks[6], (4 * hidden_size,), jnp.float32),
        "fc_w": s * jax.random.normal(ks[7], (output_size, hidden_size), jnp.float32),
        "fc_b": s * jax.random.normal(ks[8], (output_size,), jnp.float32),
    }
    return params


def decoder_decode(xs, encoder_states, hidden, cell, params):
    """Teacher-forced multi-step decode fused into ONE pallas_call (no grid).

    xs: (T, N) int32 token ids (one row per decode step)
    encoder_states: (S, N, 2H); hidden, cell: (1, N, H)
    Returns (predictions (T, N, O), hidden (1, N, H), cell (1, N, H))."""
    T, N = xs.shape
    S, _, two_h = encoder_states.shape
    H = hidden.shape[-1]
    O = params["fc_w"].shape[0]

    # ---- pad batch to a full sublane group (>= 8). Padded rows evolve from the
    # biases only; harmless since outputs are sliced back to [:N]. ----
    Np = max(8, _round_up(N, 8))
    pad_n = Np - N
    if pad_n:
        xs = jnp.pad(xs, ((0, 0), (0, pad_n)))
        encoder_states = jnp.pad(encoder_states, ((0, 0), (0, pad_n), (0, 0)))
        hidden = jnp.pad(hidden, ((0, 0), (0, pad_n), (0, 0)))
        cell = jnp.pad(cell, ((0, 0), (0, pad_n), (0, 0)))

    # ---- glue (plain JAX, runs once under jit) ----
    # time-invariant encoder energy term (+ scalar energy bias folded in)
    we_h = params["energy_w"][:, :H]                                   # (1, H)
    we_e = params["energy_w"][:, H:]                                   # (1, 2H)
    e_enc = (jnp.sum(encoder_states * we_e[None, :, :], axis=-1, keepdims=True)
             + params["energy_b"][0])                                  # (S, Np, 1)

    # embedding -> gate contribution for ALL steps as one matmul; biases folded.
    # Dropout == identity (inference).
    w_ih = params["w_ih"]                                              # (4H, 2H+E)
    w_emb = w_ih[:, 2 * H:]                                            # (4H, E)
    table_gates = (params["embedding"] @ w_emb.T
                   + params["b_ih"] + params["b_hh"])                  # (vocab, 4H)
    emb_gates = jnp.take(table_gates, xs, axis=0)                      # (T, Np, 4H)

    # fused [context | hidden] -> gates weight  (K = 3H)
    w_ctx_h = jnp.concatenate([w_ih[:, :2 * H].T, params["w_hh"].T], axis=0)   # (3H, 4H)

    # augmented FC weight: one matmul emits [pred | h_new]
    w_out = jnp.concatenate([params["fc_w"].T, jnp.eye(H, dtype=jnp.float32)], axis=1)
    b_out = jnp.concatenate([params["fc_b"], jnp.zeros((H,), jnp.float32)]).reshape(1, O + H)

    slab = O + 2 * H                                                   # lane-dense (=128 here)
    vmem_spec = pl.BlockSpec(memory_space=pltpu.MemorySpace.VMEM)

    out = pl.pallas_call(
        decoder_kernel,
        out_shape=jax.ShapeDtypeStruct((T, Np, slab), jnp.float32),
        in_specs=[vmem_spec] * 9,          # everything fully VMEM-resident
        out_specs=vmem_spec,
        compiler_params=pltpu.CompilerParams(vmem_limit_bytes=32 * 1024 * 1024),
    )(emb_gates, encoder_states, e_enc, hidden[0], cell[0],
      we_h, w_ctx_h, w_out, b_out)

    preds = out[:, :N, :O]
    h_new = out[-1, :N, O:O + H][None, :, :]
    c_new = out[-1, :N, O + H:][None, :, :]
    return preds, h_new, c_new


def decoder_forward(x, encoder_states, hidden, cell, params):
    """Exact equivalent of the PyTorch Decoder.forward (single decode step).
    x: (N,) int32 token ids.  Returns (predictions (N, O), hidden, cell)."""
    preds, h_new, c_new = decoder_decode(x[None, :], encoder_states, hidden, cell, params)
    return preds[0], h_new, c_new


def decoder_reference(xs, encoder_states, hidden, cell, params):
    """Pure-JAX reference (mirrors the PyTorch module, looped over steps)."""
    S = encoder_states.shape[0]
    H = hidden.shape[-1]

    def step(carry, x_t):
        h, c = carry
        emb = jnp.take(params["embedding"], x_t, axis=0)
        h_rep = jnp.broadcast_to(h[None], (S,) + h.shape)
        cat = jnp.concatenate([h_rep, encoder_states], axis=-1)
        energy = jax.nn.relu(cat @ params["energy_w"].T + params["energy_b"])
        att = jax.nn.softmax(energy, axis=0)
        context = jnp.einsum('snk,snl->nl', att, encoder_states)
        rnn_in = jnp.concatenate([context, emb], axis=-1)
        gates = (rnn_in @ params["w_ih"].T + params["b_ih"]
                 + h @ params["w_hh"].T + params["b_hh"])
        i = jax.nn.sigmoid(gates[:, :H])
        f = jax.nn.sigmoid(gates[:, H:2 * H])
        g = jnp.tanh(gates[:, 2 * H:3 * H])
        o = jax.nn.sigmoid(gates[:, 3 * H:])
        c_new = f * c + i * g
        h_new = o * jnp.tanh(c_new)
        pred = h_new @ params["fc_w"].T + params["fc_b"]
        return (h_new, c_new), pred

    (h, c), preds = jax.lax.scan(step, (hidden[0], cell[0]), xs)
    return preds, h[None], c[None]


if __name__ == "__main__":
    # Small shapes consistent with the module's forward:
    #   batch N=8, seq S=8, hidden H=32, embedding E=16,
    #   input vocab = 50, output vocab = 64, num_layers = 1, T=6 decode steps.
    INPUT_SIZE, EMBED, HIDDEN, OUTPUT_SIZE = 50, 16, 32, 64
    S, N, T = 8, 8, 6

    key = jax.random.PRNGKey(0)
    kp, kx, kenc, kh, kc = jax.random.split(key, 5)

    params = init_params(kp, INPUT_SIZE, EMBED, HIDDEN, OUTPUT_SIZE)

    xs = jax.random.randint(kx, (T, N), 0, INPUT_SIZE, dtype=jnp.int32)
    encoder_states = jax.random.normal(kenc, (S, N, 2 * HIDDEN), jnp.float32)
    hidden = jax.random.normal(kh, (1, N, HIDDEN), jnp.float32)
    cell = jax.random.normal(kc, (1, N, HIDDEN), jnp.float32)

    # fused multi-step decode: one pallas_call, one invocation, for all T steps
    preds, h_out, c_out = jax.jit(decoder_decode)(xs, encoder_states, hidden, cell, params)
    jax.block_until_ready((preds, h_out, c_out))

    assert preds.shape == (T, N, OUTPUT_SIZE)
    assert h_out.shape == (1, N, HIDDEN)
    assert c_out.shape == (1, N, HIDDEN)

    # single-step call matches the nn.Module.forward interface
    p1, h1, c1 = decoder_forward(xs[0], encoder_states, hidden, cell, params)
    jax.block_until_ready((p1, h1, c1))
    assert p1.shape == (N, OUTPUT_SIZE)

    # numerics vs pure-JAX reference (exact softmax division now; tight-ish tol)
    preds_ref, h_ref, c_ref = decoder_reference(xs, encoder_states, hidden, cell, params)
    assert jnp.allclose(preds, preds_ref, rtol=5e-3, atol=5e-3)
    assert jnp.allclose(h_out, h_ref, rtol=5e-3, atol=5e-3)
    assert jnp.allclose(c_out, c_ref, rtol=5e-3, atol=5e-3)

    print("KERNEL_OK")
</pallas_src>

<mosaic_0001>
module attributes {stable_mosaic.version = 11 : i64} {
  func.func @decoder_kernel(%arg0: memref<6x8x128xf32, #tpu.memory_space<vmem>>, %arg1: memref<8x8x64xf32, #tpu.memory_space<vmem>>, %arg2: memref<8x8x1xf32, #tpu.memory_space<vmem>>, %arg3: memref<8x32xf32, #tpu.memory_space<vmem>>, %arg4: memref<8x32xf32, #tpu.memory_space<vmem>>, %arg5: memref<1x32xf32, #tpu.memory_space<vmem>>, %arg6: memref<96x128xf32, #tpu.memory_space<vmem>>, %arg7: memref<32x96xf32, #tpu.memory_space<vmem>>, %arg8: memref<1x96xf32, #tpu.memory_space<vmem>>, %arg9: memref<6x8x128xf32, #tpu.memory_space<vmem>>) attributes {dimension_semantics = [], scalar_prefetch = 0 : i64, scratch_operands = 0 : i64, tpu.core_type = #tpu.core_type<tc>} {
    %c0 = arith.constant 0 : index
    %c0_0 = arith.constant 0 : index
    %c0_1 = arith.constant 0 : index
    %0 = vector.load %arg1[%c0, %c0_0, %c0_1] : memref<8x8x64xf32, #tpu.memory_space<vmem>>, vector<8x8x64xf32>
    %c0_2 = arith.constant 0 : index
    %c0_3 = arith.constant 0 : index
    %c0_4 = arith.constant 0 : index
    %1 = vector.load %arg2[%c0_2, %c0_3, %c0_4] : memref<8x8x1xf32, #tpu.memory_space<vmem>>, vector<8x8x1xf32>
    %c0_5 = arith.constant 0 : index
    %c0_6 = arith.constant 0 : index
    %2 = vector.load %arg5[%c0_5, %c0_6] : memref<1x32xf32, #tpu.memory_space<vmem>>, vector<1x32xf32>
    %c0_7 = arith.constant 0 : index
    %c0_8 = arith.constant 0 : index
    %3 = vector.load %arg6[%c0_7, %c0_8] : memref<96x128xf32, #tpu.memory_space<vmem>>, vector<96x128xf32>
    %c0_9 = arith.constant 0 : index
    %c0_10 = arith.constant 0 : index
    %4 = vector.load %arg7[%c0_9, %c0_10] : memref<32x96xf32, #tpu.memory_space<vmem>>, vector<32x96xf32>
    %c0_11 = arith.constant 0 : index
    %c0_12 = arith.constant 0 : index
    %5 = vector.load %arg8[%c0_11, %c0_12] : memref<1x96xf32, #tpu.memory_space<vmem>>, vector<1x96xf32>
    %c0_13 = arith.constant 0 : index
    %c0_14 = arith.constant 0 : index
    %6 = vector.load %arg3[%c0_13, %c0_14] : memref<8x32xf32, #tpu.memory_space<vmem>>, vector<8x32xf32>
    %c0_15 = arith.constant 0 : index
    %c0_16 = arith.constant 0 : index
    %7 = vector.load %arg4[%c0_15, %c0_16] : memref<8x32xf32, #tpu.memory_space<vmem>>, vector<8x32xf32>
    %c0_i32 = arith.constant 0 : i32
    %8 = vector.broadcast %2 : vector<1x32xf32> to vector<8x32xf32>
    %9 = arith.mulf %6, %8 : vector<8x32xf32>
    %cst = arith.constant dense<0.000000e+00> : vector<8xf32>
    %10 = vector.multi_reduction <add>, %9, %cst [1] : vector<8x32xf32> to vector<8xf32>
    %11 = vector.shape_cast %10 : vector<8xf32> to vector<8x1xf32>
    %12 = vector.shape_cast %11 : vector<8x1xf32> to vector<1x8x1xf32>
    %13 = vector.broadcast %12 : vector<1x8x1xf32> to vector<8x8x1xf32>
    %14 = arith.addf %13, %1 : vector<8x8x1xf32>
    %cst_17 = arith.constant 0.000000e+00 : f32
    %15 = vector.broadcast %cst_17 : f32 to vector<8x8x1xf32>
    %16 = arith.maximumf %14, %15 : vector<8x8x1xf32>
    %cst_18 = arith.constant dense<0xFF800000> : vector<8x1xf32>
    %17 = vector.multi_reduction <maximumf>, %16, %cst_18 [0] : vector<8x8x1xf32> to vector<8x1xf32>
    %18 = vector.shape_cast %17 : vector<8x1xf32> to vector<1x8x1xf32>
    %19 = vector.broadcast %18 : vector<1x8x1xf32> to vector<8x8x1xf32>
    %20 = arith.subf %16, %19 : vector<8x8x1xf32>
    %21 = math.exp %20 : vector<8x8x1xf32>
    %cst_19 = arith.constant dense<0.000000e+00> : vector<8x1xf32>
    %22 = vector.multi_reduction <add>, %21, %cst_19 [0] : vector<8x8x1xf32> to vector<8x1xf32>
    %23 = vector.shape_cast %22 : vector<8x1xf32> to vector<1x8x1xf32>
    %24 = vector.broadcast %23 : vector<1x8x1xf32> to vector<8x8x1xf32>
    %25 = arith.divf %21, %24 : vector<8x8x1xf32>
    %26 = vector.broadcast %25 : vector<8x8x1xf32> to vector<8x8x64xf32>
    %27 = arith.mulf %26, %0 : vector<8x8x64xf32>
    %cst_20 = arith.constant dense<0.000000e+00> : vector<8x64xf32>
    %28 = vector.multi_reduction <add>, %27, %cst_20 [0] : vector<8x8x64xf32> to vector<8x64xf32>
    %29 = tpu.concatenate %28, %6 in 1 : vector<8x64xf32>, vector<8x32xf32> -> vector<8x96xf32>
    %cst_21 = arith.constant dense<0.000000e+00> : vector<8x128xf32>
    %30 = tpu.matmul %29, %3, %cst_21 {dimension_numbers = #tpu.dot_dimension_numbers<[1], [0], [0], [1], [0, 0, 1, 1], [], []>} : vector<8x96xf32>, vector<96x128xf32>, vector<8x128xf32> -> vector<8x128xf32>
    %31 = arith.index_cast %c0_i32 : i32 to index
    %c0_22 = arith.constant 0 : index
    %c0_23 = arith.constant 0 : index
    %32 = vector.load %arg0[%31, %c0_22, %c0_23] : memref<6x8x128xf32, #tpu.memory_space<vmem>>, vector<1x8x128xf32>
    %33 = vector.shape_cast %32 : vector<1x8x128xf32> to vector<8x128xf32>
    %34 = arith.addf %30, %33 : vector<8x128xf32>
    %35 = vector.extract_strided_slice %34 {offsets = [0, 0], sizes = [8, 32], strides = [1, 1]} : vector<8x128xf32> to vector<8x32xf32>
    %36 = arith.negf %35 : vector<8x32xf32>
    %37 = math.exp %36 : vector<8x32xf32>
    %cst_24 = arith.constant 1.000000e+00 : f32
    %38 = vector.broadcast %cst_24 : f32 to vector<8x32xf32>
    %39 = arith.addf %38, %37 : vector<8x32xf32>
    %40 = arith.divf %38, %39 : vector<8x32xf32>
    %41 = vector.extract_strided_slice %34 {offsets = [0, 32], sizes = [8, 32], strides = [1, 1]} : vector<8x128xf32> to vector<8x32xf32>
    %42 = arith.negf %41 : vector<8x32xf32>
    %43 = math.exp %42 : vector<8x32xf32>
    %cst_25 = arith.constant 1.000000e+00 : f32
    %44 = vector.broadcast %cst_25 : f32 to vector<8x32xf32>
    %45 = arith.addf %44, %43 : vector<8x32xf32>
    %46 = arith.divf %44, %45 : vector<8x32xf32>
    %47 = vector.extract_strided_slice %34 {offsets = [0, 64], sizes = [8, 32], strides = [1, 1]} : vector<8x128xf32> to vector<8x32xf32>
    %48 = math.tanh %47 : vector<8x32xf32>
    %49 = vector.extract_strided_slice %34 {offsets = [0, 96], sizes = [8, 32], strides = [1, 1]} : vector<8x128xf32> to vector<8x32xf32>
    %50 = arith.negf %49 : vector<8x32xf32>
    %51 = math.exp %50 : vector<8x32xf32>
    %cst_26 = arith.constant 1.000000e+00 : f32
    %52 = vector.broadcast %cst_26 : f32 to vector<8x32xf32>
    %53 = arith.addf %52, %51 : vector<8x32xf32>
    %54 = arith.divf %52, %53 : vector<8x32xf32>
    %55 = arith.mulf %46, %7 : vector<8x32xf32>
    %56 = arith.mulf %40, %48 : vector<8x32xf32>
    %57 = arith.addf %55, %56 : vector<8x32xf32>
    %58 = math.tanh %57 : vector<8x32xf32>
    %59 = arith.mulf %54, %58 : vector<8x32xf32>
    %cst_27 = arith.constant dense<0.000000e+00> : vector<8x96xf32>
    %60 = tpu.matmul %59, %4, %cst_27 {dimension_numbers = #tpu.dot_dimension_numbers<[1], [0], [0], [1], [0, 0, 1, 1], [], []>} : vector<8x32xf32>, vector<32x96xf32>, vector<8x96xf32> -> vector<8x96xf32>
    %61 = vector.broadcast %5 : vector<1x96xf32> to vector<8x96xf32>
    %62 = arith.addf %60, %61 : vector<8x96xf32>
    %63 = tpu.concatenate %62, %57 in 1 : vector<8x96xf32>, vector<8x32xf32> -> vector<8x128xf32>
    %64 = vector.shape_cast %63 : vector<8x128xf32> to vector<1x8x128xf32>
    %65 = arith.index_cast %c0_i32 : i32 to index
    %c0_28 = arith.constant 0 : index
    %c0_29 = arith.constant 0 : index
    %66 = vector.load %arg9[%65, %c0_28, %c0_29] : memref<6x8x128xf32, #tpu.memory_space<vmem>>, vector<1x8x128xf32>
    tpu.vector_store %arg9[%65, %c0_28, %c0_29], %64 {strides = array<i32>} : memref<6x8x128xf32, #tpu.memory_space<vmem>>, vector<1x8x128xf32>,
    %c1_i32 = arith.constant 1 : i32
    %67 = vector.broadcast %2 : vector<1x32xf32> to vector<8x32xf32>
    %68 = arith.mulf %59, %67 : vector<8x32xf32>
    %cst_30 = arith.constant dense<0.000000e+00> : vector<8xf32>
    %69 = vector.multi_reduction <add>, %68, %cst_30 [1] : vector<8x32xf32> to vector<8xf32>
    %70 = vector.shape_cast %69 : vector<8xf32> to vector<8x1xf32>
    %71 = vector.shape_cast %70 : vector<8x1xf32> to vector<1x8x1xf32>
    %72 = vector.broadcast %71 : vector<1x8x1xf32> to vector<8x8x1xf32>
    %73 = arith.addf %72, %1 : vector<8x8x1xf32>
    %cst_31 = arith.constant 0.000000e+00 : f32
    %74 = vector.broadcast %cst_31 : f32 to vector<8x8x1xf32>
    %75 = arith.maximumf %73, %74 : vector<8x8x1xf32>
    %cst_32 = arith.constant dense<0xFF800000> : vector<8x1xf32>
    %76 = vector.multi_reduction <maximumf>, %75, %cst_32 [0] : vector<8x8x1xf32> to vector<8x1xf32>
    %77 = vector.shape_cast %76 : vector<8x1xf32> to vector<1x8x1xf32>
    %78 = vector.broadcast %77 : vector<1x8x1xf32> to vector<8x8x1xf32>
    %79 = arith.subf %75, %78 : vector<8x8x1xf32>
    %80 = math.exp %79 : vector<8x8x1xf32>
    %cst_33 = arith.constant dense<0.000000e+00> : vector<8x1xf32>
    %81 = vector.multi_reduction <add>, %80, %cst_33 [0] : vector<8x8x1xf32> to vector<8x1xf32>
    %82 = vector.shape_cast %81 : vector<8x1xf32> to vector<1x8x1xf32>
    %83 = vector.broadcast %82 : vector<1x8x1xf32> to vector<8x8x1xf32>
    %84 = arith.divf %80, %83 : vector<8x8x1xf32>
    %85 = vector.broadcast %84 : vector<8x8x1xf32> to vector<8x8x64xf32>
    %86 = arith.mulf %85, %0 : vector<8x8x64xf32>
    %cst_34 = arith.constant dense<0.000000e+00> : vector<8x64xf32>
    %87 = vector.multi_reduction <add>, %86, %cst_34 [0] : vector<8x8x64xf32> to vector<8x64xf32>
    %88 = tpu.concatenate %87, %59 in 1 : vector<8x64xf32>, vector<8x32xf32> -> vector<8x96xf32>
    %cst_35 = arith.constant dense<0.000000e+00> : vector<8x128xf32>
    %89 = tpu.matmul %88, %3, %cst_35 {dimension_numbers = #tpu.dot_dimension_numbers<[1], [0], [0], [1], [0, 0, 1, 1], [], []>} : vector<8x96xf32>, vector<96x128xf32>, vector<8x128xf32> -> vector<8x128xf32>
    %90 = arith.index_cast %c1_i32 : i32 to index
    %c0_36 = arith.constant 0 : index
    %c0_37 = arith.constant 0 : index
    %91 = vector.load %arg0[%90, %c0_36, %c0_37] : memref<6x8x128xf32, #tpu.memory_space<vmem>>, vector<1x8x128xf32>
    %92 = vector.shape_cast %91 : vector<1x8x128xf32> to vector<8x128xf32>
    %93 = arith.addf %89, %92 : vector<8x128xf32>
    %94 = vector.extract_strided_slice %93 {offsets = [0, 0], sizes = [8, 32], strides = [1, 1]} : vector<8x128xf32> to vector<8x32xf32>
    %95 = arith.negf %94 : vector<8x32xf32>
    %96 = math.exp %95 : vector<8x32xf32>
    %cst_38 = arith.constant 1.000000e+00 : f32
    %97 = vector.broadcast %cst_38 : f32 to vector<8x32xf32>
    %98 = arith.addf %97, %96 : vector<8x32xf32>
    %99 = arith.divf %97, %98 : vector<8x32xf32>
    %100 = vector.extract_strided_slice %93 {offsets = [0, 32], sizes = [8, 32], strides = [1, 1]} : vector<8x128xf32> to vector<8x32xf32>
    %101 = arith.negf %100 : vector<8x32xf32>
    %102 = math.exp %101 : vector<8x32xf32>
    %cst_39 = arith.constant 1.000000e+00 : f32
    %103 = vector.broadcast %cst_39 : f32 to vector<8x32xf32>
    %104 = arith.addf %103, %102 : vector<8x32xf32>
    %105 = arith.divf %103, %104 : vector<8x32xf32>
    %106 = vector.extract_strided_slice %93 {offsets = [0, 64], sizes = [8, 32], strides = [1, 1]} : vector<8x128xf32> to vector<8x32xf32>
    %107 = math.tanh %106 : vector<8x32xf32>
    %108 = vector.extract_strided_slice %93 {offsets = [0, 96], sizes = [8, 32], strides = [1, 1]} : vector<8x128xf32> to vector<8x32xf32>
    %109 = arith.negf %108 : vector<8x32xf32>
    %110 = math.exp %109 : vector<8x32xf32>
    %cst_40 = arith.constant 1.000000e+00 : f32
    %111 = vector.broadcast %cst_40 : f32 to vector<8x32xf32>
    %112 = arith.addf %111, %110 : vector<8x32xf32>
    %113 = arith.divf %111, %112 : vector<8x32xf32>
    %114 = arith.mulf %105, %57 : vector<8x32xf32>
    %115 = arith.mulf %99, %107 : vector<8x32xf32>
    %116 = arith.addf %114, %115 : vector<8x32xf32>
    %117 = math.tanh %116 : vector<8x32xf32>
    %118 = arith.mulf %113, %117 : vector<8x32xf32>
    %cst_41 = arith.constant dense<0.000000e+00> : vector<8x96xf32>
    %119 = tpu.matmul %118, %4, %cst_41 {dimension_numbers = #tpu.dot_dimension_numbers<[1], [0], [0], [1], [0, 0, 1, 1], [], []>} : vector<8x32xf32>, vector<32x96xf32>, vector<8x96xf32> -> vector<8x96xf32>
    %120 = vector.broadcast %5 : vector<1x96xf32> to vector<8x96xf32>
    %121 = arith.addf %119, %120 : vector<8x96xf32>
    %122 = tpu.concatenate %121, %116 in 1 : vector<8x96xf32>, vector<8x32xf32> -> vector<8x128xf32>
    %123 = vector.shape_cast %122 : vector<8x128xf32> to vector<1x8x128xf32>
    %124 = arith.index_cast %c1_i32 : i32 to index
    %c0_42 = arith.constant 0 : index
    %c0_43 = arith.constant 0 : index
    %125 = vector.load %arg9[%124, %c0_42, %c0_43] : memref<6x8x128xf32, #tpu.memory_space<vmem>>, vector<1x8x128xf32>
    tpu.vector_store %arg9[%124, %c0_42, %c0_43], %123 {strides = array<i32>} : memref<6x8x128xf32, #tpu.memory_space<vmem>>, vector<1x8x128xf32>,
    %c2_i32 = arith.constant 2 : i32
    %126 = vector.broadcast %2 : vector<1x32xf32> to vector<8x32xf32>
    %127 = arith.mulf %118, %126 : vector<8x32xf32>
    %cst_44 = arith.constant dense<0.000000e+00> : vector<8xf32>
    %128 = vector.multi_reduction <add>, %127, %cst_44 [1] : vector<8x32xf32> to vector<8xf32>
    %129 = vector.shape_cast %128 : vector<8xf32> to vector<8x1xf32>
    %130 = vector.shape_cast %129 : vector<8x1xf32> to vector<1x8x1xf32>
    %131 = vector.broadcast %130 : vector<1x8x1xf32> to vector<8x8x1xf32>
    %132 = arith.addf %131, %1 : vector<8x8x1xf32>
    %cst_45 = arith.constant 0.000000e+00 : f32
    %133 = vector.broadcast %cst_45 : f32 to vector<8x8x1xf32>
    %134 = arith.maximumf %132, %133 : vector<8x8x1xf32>
    %cst_46 = arith.constant dense<0xFF800000> : vector<8x1xf32>
    %135 = vector.multi_reduction <maximumf>, %134, %cst_46 [0] : vector<8x8x1xf32> to vector<8x1xf32>
    %136 = vector.shape_cast %135 : vector<8x1xf32> to vector<1x8x1xf32>
    %137 = vector.broadcast %136 : vector<1x8x1xf32> to vector<8x8x1xf32>
    %138 = arith.subf %134, %137 : vector<8x8x1xf32>
    %139 = math.exp %138 : vector<8x8x1xf32>
    %cst_47 = arith.constant dense<0.000000e+00> : vector<8x1xf32>
    %140 = vector.multi_reduction <add>, %139, %cst_47 [0] : vector<8x8x1xf32> to vector<8x1xf32>
    %141 = vector.shape_cast %140 : vector<8x1xf32> to vector<1x8x1xf32>
    %142 = vector.broadcast %141 : vector<1x8x1xf32> to vector<8x8x1xf32>
    %143 = arith.divf %139, %142 : vector<8x8x1xf32>
    %144 = vector.broadcast %143 : vector<8x8x1xf32> to vector<8x8x64xf32>
    %145 = arith.mulf %144, %0 : vector<8x8x64xf32>
    %cst_48 = arith.constant dense<0.000000e+00> : vector<8x64xf32>
    %146 = vector.multi_reduction <add>, %145, %cst_48 [0] : vector<8x8x64xf32> to vector<8x64xf32>
    %147 = tpu.concatenate %146, %118 in 1 : vector<8x64xf32>, vector<8x32xf32> -> vector<8x96xf32>
    %cst_49 = arith.constant dense<0.000000e+00> : vector<8x128xf32>
    %148 = tpu.matmul %147, %3, %cst_49 {dimension_numbers = #tpu.dot_dimension_numbers<[1], [0], [0], [1], [0, 0, 1, 1], [], []>} : vector<8x96xf32>, vector<96x128xf32>, vector<8x128xf32> -> vector<8x128xf32>
    %149 = arith.index_cast %c2_i32 : i32 to index
    %c0_50 = arith.constant 0 : index
    %c0_51 = arith.constant 0 : index
    %150 = vector.load %arg0[%149, %c0_50, %c0_51] : memref<6x8x128xf32, #tpu.memory_space<vmem>>, vector<1x8x128xf32>
    %151 = vector.shape_cast %150 : vector<1x8x128xf32> to vector<8x128xf32>
    %152 = arith.addf %148, %151 : vector<8x128xf32>
    %153 = vector.extract_strided_slice %152 {offsets = [0, 0], sizes = [8, 32], strides = [1, 1]} : vector<8x128xf32> to vector<8x32xf32>
    %154 = arith.negf %153 : vector<8x32xf32>
    %155 = math.exp %154 : vector<8x32xf32>
    %cst_52 = arith.constant 1.000000e+00 : f32
    %156 = vector.broadcast %cst_52 : f32 to vector<8x32xf32>
    %157 = arith.addf %156, %155 : vector<8x32xf32>
    %158 = arith.divf %156, %157 : vector<8x32xf32>
    %159 = vector.extract_strided_slice %152 {offsets = [0, 32], sizes = [8, 32], strides = [1, 1]} : vector<8x128xf32> to vector<8x32xf32>
    %160 = arith.negf %159 : vector<8x32xf32>
    %161 = math.exp %160 : vector<8x32xf32>
    %cst_53 = arith.constant 1.000000e+00 : f32
    %162 = vector.broadcast %cst_53 : f32 to vector<8x32xf32>
    %163 = arith.addf %162, %161 : vector<8x32xf32>
    %164 = arith.divf %162, %163 : vector<8x32xf32>
    %165 = vector.extract_strided_slice %152 {offsets = [0, 64], sizes = [8, 32], strides = [1, 1]} : vector<8x128xf32> to vector<8x32xf32>
    %166 = math.tanh %165 : vector<8x32xf32>
    %167 = vector.extract_strided_slice %152 {offsets = [0, 96], sizes = [8, 32], strides = [1, 1]} : vector<8x128xf32> to vector<8x32xf32>
    %168 = arith.negf %167 : vector<8x32xf32>
    %169 = math.exp %168 : vector<8x32xf32>
    %cst_54 = arith.constant 1.000000e+00 : f32
    %170 = vector.broadcast %cst_54 : f32 to vector<8x32xf32>
    %171 = arith.addf %170, %169 : vector<8x32xf32>
    %172 = arith.divf %170, %171 : vector<8x32xf32>
    %173 = arith.mulf %164, %116 : vector<8x32xf32>
    %174 = arith.mulf %158, %166 : vector<8x32xf32>
    %175 = arith.addf %173, %174 : vector<8x32xf32>
    %176 = math.tanh %175 : vector<8x32xf32>
    %177 = arith.mulf %172, %176 : vector<8x32xf32>
    %cst_55 = arith.constant dense<0.000000e+00> : vector<8x96xf32>
    %178 = tpu.matmul %177, %4, %cst_55 {dimension_numbers = #tpu.dot_dimension_numbers<[1], [0], [0], [1], [0, 0, 1, 1], [], []>} : vector<8x32xf32>, vector<32x96xf32>, vector<8x96xf32> -> vector<8x96xf32>
    %179 = vector.broadcast %5 : vector<1x96xf32> to vector<8x96xf32>
    %180 = arith.addf %178, %179 : vector<8x96xf32>
    %181 = tpu.concatenate %180, %175 in 1 : vector<8x96xf32>, vector<8x32xf32> -> vector<8x128xf32>
    %182 = vector.shape_cast %181 : vector<8x128xf32> to vector<1x8x128xf32>
    %183 = arith.index_cast %c2_i32 : i32 to index
    %c0_56 = arith.constant 0 : index
    %c0_57 = arith.constant 0 : index
    %184 = vector.load %arg9[%183, %c0_56, %c0_57] : memref<6x8x128xf32, #tpu.memory_space<vmem>>, vector<1x8x128xf32>
    tpu.vector_store %arg9[%183, %c0_56, %c0_57], %182 {strides = array<i32>} : memref<6x8x128xf32, #tpu.memory_space<vmem>>, vector<1x8x128xf32>,
    %c3_i32 = arith.constant 3 : i32
    %185 = vector.broadcast %2 : vector<1x32xf32> to vector<8x32xf32>
    %186 = arith.mulf %177, %185 : vector<8x32xf32>
    %cst_58 = arith.constant dense<0.000000e+00> : vector<8xf32>
    %187 = vector.multi_reduction <add>, %186, %cst_58 [1] : vector<8x32xf32> to vector<8xf32>
    %188 = vector.shape_cast %187 : vector<8xf32> to vector<8x1xf32>
    %189 = vector.shape_cast %188 : vector<8x1xf32> to vector<1x8x1xf32>
    %190 = vector.broadcast %189 : vector<1x8x1xf32> to vector<8x8x1xf32>
    %191 = arith.addf %190, %1 : vector<8x8x1xf32>
    %cst_59 = arith.constant 0.000000e+00 : f32
    %192 = vector.broadcast %cst_59 : f32 to vector<8x8x1xf32>
    %193 = arith.maximumf %191, %192 : vector<8x8x1xf32>
    %cst_60 = arith.constant dense<0xFF800000> : vector<8x1xf32>
    %194 = vector.multi_reduction <maximumf>, %193, %cst_60 [0] : vector<8x8x1xf32> to vector<8x1xf32>
    %195 = vector.shape_cast %194 : vector<8x1xf32> to vector<1x8x1xf32>
    %196 = vector.broadcast %195 : vector<1x8x1xf32> to vector<8x8x1xf32>
    %197 = arith.subf %193, %196 : vector<8x8x1xf32>
    %198 = math.exp %197 : vector<8x8x1xf32>
    %cst_61 = arith.constant dense<0.000000e+00> : vector<8x1xf32>
    %199 = vector.multi_reduction <add>, %198, %cst_61 [0] : vector<8x8x1xf32> to vector<8x1xf32>
    %200 = vector.shape_cast %199 : vector<8x1xf32> to vector<1x8x1xf32>
    %201 = vector.broadcast %200 : vector<1x8x1xf32> to vector<8x8x1xf32>
    %202 = arith.divf %198, %201 : vector<8x8x1xf32>
    %203 = vector.broadcast %202 : vector<8x8x1xf32> to vector<8x8x64xf32>
    %204 = arith.mulf %203, %0 : vector<8x8x64xf32>
    %cst_62 = arith.constant dense<0.000000e+00> : vector<8x64xf32>
    %205 = vector.multi_reduction <add>, %204, %cst_62 [0] : vector<8x8x64xf32> to vector<8x64xf32>
    %206 = tpu.concatenate %205, %177 in 1 : vector<8x64xf32>, vector<8x32xf32> -> vector<8x96xf32>
    %cst_63 = arith.constant dense<0.000000e+00> : vector<8x128xf32>
    %207 = tpu.matmul %206, %3, %cst_63 {dimension_numbers = #tpu.dot_dimension_numbers<[1], [0], [0], [1], [0, 0, 1, 1], [], []>} : vector<8x96xf32>, vector<96x128xf32>, vector<8x128xf32> -> vector<8x128xf32>
    %208 = arith.index_cast %c3_i32 : i32 to index
    %c0_64 = arith.constant 0 : index
    %c0_65 = arith.constant 0 : index
    %209 = vector.load %arg0[%208, %c0_64, %c0_65] : memref<6x8x128xf32, #tpu.memory_space<vmem>>, vector<1x8x128xf32>
    %210 = vector.shape_cast %209 : vector<1x8x128xf32> to vector<8x128xf32>
    %211 = arith.addf %207, %210 : vector<8x128xf32>
    %212 = vector.extract_strided_slice %211 {offsets = [0, 0], sizes = [8, 32], strides = [1, 1]} : vector<8x128xf32> to vector<8x32xf32>
    %213 = arith.negf %212 : vector<8x32xf32>
    %214 = math.exp %213 : vector<8x32xf32>
    %cst_66 = arith.constant 1.000000e+00 : f32
    %215 = vector.broadcast %cst_66 : f32 to vector<8x32xf32>
    %216 = arith.addf %215, %214 : vector<8x32xf32>
    %217 = arith.divf %215, %216 : vector<8x32xf32>
    %218 = vector.extract_strided_slice %211 {offsets = [0, 32], sizes = [8, 32], strides = [1, 1]} : vector<8x128xf32> to vector<8x32xf32>
    %219 = arith.negf %218 : vector<8x32xf32>
    %220 = math.exp %219 : vector<8x32xf32>
    %cst_67 = arith.constant 1.000000e+00 : f32
    %221 = vector.broadcast %cst_67 : f32 to vector<8x32xf32>
    %222 = arith.addf %221, %220 : vector<8x32xf32>
    %223 = arith.divf %221, %222 : vector<8x32xf32>
    %224 = vector.extract_strided_slice %211 {offsets = [0, 64], sizes = [8, 32], strides = [1, 1]} : vector<8x128xf32> to vector<8x32xf32>
    %225 = math.tanh %224 : vector<8x32xf32>
    %226 = vector.extract_strided_slice %211 {offsets = [0, 96], sizes = [8, 32], strides = [1, 1]} : vector<8x128xf32> to vector<8x32xf32>
    %227 = arith.negf %226 : vector<8x32xf32>
    %228 = math.exp %227 : vector<8x32xf32>
    %cst_68 = arith.constant 1.000000e+00 : f32
    %229 = vector.broadcast %cst_68 : f32 to vector<8x32xf32>
    %230 = arith.addf %229, %228 : vector<8x32xf32>
    %231 = arith.divf %229, %230 : vector<8x32xf32>
    %232 = arith.mulf %223, %175 : vector<8x32xf32>
    %233 = arith.mulf %217, %225 : vector<8x32xf32>
    %234 = arith.addf %232, %233 : vector<8x32xf32>
    %235 = math.tanh %234 : vector<8x32xf32>
    %236 = arith.mulf %231, %235 : vector<8x32xf32>
    %cst_69 = arith.constant dense<0.000000e+00> : vector<8x96xf32>
    %237 = tpu.matmul %236, %4, %cst_69 {dimension_numbers = #tpu.dot_dimension_numbers<[1], [0], [0], [1], [0, 0, 1, 1], [], []>} : vector<8x32xf32>, vector<32x96xf32>, vector<8x96xf32> -> vector<8x96xf32>
    %238 = vector.broadcast %5 : vector<1x96xf32> to vector<8x96xf32>
    %239 = arith.addf %237, %238 : vector<8x96xf32>
    %240 = tpu.concatenate %239, %234 in 1 : vector<8x96xf32>, vector<8x32xf32> -> vector<8x128xf32>
    %241 = vector.shape_cast %240 : vector<8x128xf32> to vector<1x8x128xf32>
    %242 = arith.index_cast %c3_i32 : i32 to index
    %c0_70 = arith.constant 0 : index
    %c0_71 = arith.constant 0 : index
    %243 = vector.load %arg9[%242, %c0_70, %c0_71] : memref<6x8x128xf32, #tpu.memory_space<vmem>>, vector<1x8x128xf32>
    tpu.vector_store %arg9[%242, %c0_70, %c0_71], %241 {strides = array<i32>} : memref<6x8x128xf32, #tpu.memory_space<vmem>>, vector<1x8x128xf32>,
    %c4_i32 = arith.constant 4 : i32
    %244 = vector.broadcast %2 : vector<1x32xf32> to vector<8x32xf32>
    %245 = arith.mulf %236, %244 : vector<8x32xf32>
    %cst_72 = arith.constant dense<0.000000e+00> : vector<8xf32>
    %246 = vector.multi_reduction <add>, %245, %cst_72 [1] : vector<8x32xf32> to vector<8xf32>
    %247 = vector.shape_cast %246 : vector<8xf32> to vector<8x1xf32>
    %248 = vector.shape_cast %247 : vector<8x1xf32> to vector<1x8x1xf32>
    %249 = vector.broadcast %248 : vector<1x8x1xf32> to vector<8x8x1xf32>
    %250 = arith.addf %249, %1 : vector<8x8x1xf32>
    %cst_73 = arith.constant 0.000000e+00 : f32
    %251 = vector.broadcast %cst_73 : f32 to vector<8x8x1xf32>
    %252 = arith.maximumf %250, %251 : vector<8x8x1xf32>
    %cst_74 = arith.constant dense<0xFF800000> : vector<8x1xf32>
    %253 = vector.multi_reduction <maximumf>, %252, %cst_74 [0] : vector<8x8x1xf32> to vector<8x1xf32>
    %254 = vector.shape_cast %253 : vector<8x1xf32> to vector<1x8x1xf32>
    %255 = vector.broadcast %254 : vector<1x8x1xf32> to vector<8x8x1xf32>
    %256 = arith.subf %252, %255 : vector<8x8x1xf32>
    %257 = math.exp %256 : vector<8x8x1xf32>
    %cst_75 = arith.constant dense<0.000000e+00> : vector<8x1xf32>
    %258 = vector.multi_reduction <add>, %257, %cst_75 [0] : vector<8x8x1xf32> to vector<8x1xf32>
    %259 = vector.shape_cast %258 : vector<8x1xf32> to vector<1x8x1xf32>
    %260 = vector.broadcast %259 : vector<1x8x1xf32> to vector<8x8x1xf32>
    %261 = arith.divf %257, %260 : vector<8x8x1xf32>
    %262 = vector.broadcast %261 : vector<8x8x1xf32> to vector<8x8x64xf32>
    %263 = arith.mulf %262, %0 : vector<8x8x64xf32>
    %cst_76 = arith.constant dense<0.000000e+00> : vector<8x64xf32>
    %264 = vector.multi_reduction <add>, %263, %cst_76 [0] : vector<8x8x64xf32> to vector<8x64xf32>
    %265 = tpu.concatenate %264, %236 in 1 : vector<8x64xf32>, vector<8x32xf32> -> vector<8x96xf32>
    %cst_77 = arith.constant dense<0.000000e+00> : vector<8x128xf32>
    %266 = tpu.matmul %265, %3, %cst_77 {dimension_numbers = #tpu.dot_dimension_numbers<[1], [0], [0], [1], [0, 0, 1, 1], [], []>} : vector<8x96xf32>, vector<96x128xf32>, vector<8x128xf32> -> vector<8x128xf32>
    %267 = arith.index_cast %c4_i32 : i32 to index
    %c0_78 = arith.constant 0 : index
    %c0_79 = arith.constant 0 : index
    %268 = vector.load %arg0[%267, %c0_78, %c0_79] : memref<6x8x128xf32, #tpu.memory_space<vmem>>, vector<1x8x128xf32>
    %269 = vector.shape_cast %268 : vector<1x8x128xf32> to vector<8x128xf32>
    %270 = arith.addf %266, %269 : vector<8x128xf32>
    %271 = vector.extract_strided_slice %270 {offsets = [0, 0], sizes = [8, 32], strides = [1, 1]} : vector<8x128xf32> to vector<8x32xf32>
    %272 = arith.negf %271 : vector<8x32xf32>
    %273 = math.exp %272 : vector<8x32xf32>
    %cst_80 = arith.constant 1.000000e+00 : f32
    %274 = vector.broadcast %cst_80 : f32 to vector<8x32xf32>
    %275 = arith.addf %274, %273 : vector<8x32xf32>
    %276 = arith.divf %274, %275 : vector<8x32xf32>
    %277 = vector.extract_strided_slice %270 {offsets = [0, 32], sizes = [8, 32], strides = [1, 1]} : vector<8x128xf32> to vector<8x32xf32>
    %278 = arith.negf %277 : vector<8x32xf32>
    %279 = math.exp %278 : vector<8x32xf32>
    %cst_81 = arith.constant 1.000000e+00 : f32
    %280 = vector.broadcast %cst_81 : f32 to vector<8x32xf32>
    %281 = arith.addf %280, %279 : vector<8x32xf32>
    %282 = arith.divf %280, %281 : vector<8x32xf32>
    %283 = vector.extract_strided_slice %270 {offsets = [0, 64], sizes = [8, 32], strides = [1, 1]} : vector<8x128xf32> to vector<8x32xf32>
    %284 = math.tanh %283 : vector<8x32xf32>
    %285 = vector.extract_strided_slice %270 {offsets = [0, 96], sizes = [8, 32], strides = [1, 1]} : vector<8x128xf32> to vector<8x32xf32>
    %286 = arith.negf %285 : vector<8x32xf32>
    %287 = math.exp %286 : vector<8x32xf32>
    %cst_82 = arith.constant 1.000000e+00 : f32
    %288 = vector.broadcast %cst_82 : f32 to vector<8x32xf32>
    %289 = arith.addf %288, %287 : vector<8x32xf32>
    %290 = arith.divf %288, %289 : vector<8x32xf32>
    %291 = arith.mulf %282, %234 : vector<8x32xf32>
    %292 = arith.mulf %276, %284 : vector<8x32xf32>
    %293 = arith.addf %291, %292 : vector<8x32xf32>
    %294 = math.tanh %293 : vector<8x32xf32>
    %295 = arith.mulf %290, %294 : vector<8x32xf32>
    %cst_83 = arith.constant dense<0.000000e+00> : vector<8x96xf32>
    %296 = tpu.matmul %295, %4, %cst_83 {dimension_numbers = #tpu.dot_dimension_numbers<[1], [0], [0], [1], [0, 0, 1, 1], [], []>} : vector<8x32xf32>, vector<32x96xf32>, vector<8x96xf32> -> vector<8x96xf32>
    %297 = vector.broadcast %5 : vector<1x96xf32> to vector<8x96xf32>
    %298 = arith.addf %296, %297 : vector<8x96xf32>
    %299 = tpu.concatenate %298, %293 in 1 : vector<8x96xf32>, vector<8x32xf32> -> vector<8x128xf32>
    %300 = vector.shape_cast %299 : vector<8x128xf32> to vector<1x8x128xf32>
    %301 = arith.index_cast %c4_i32 : i32 to index
    %c0_84 = arith.constant 0 : index
    %c0_85 = arith.constant 0 : index
    %302 = vector.load %arg9[%301, %c0_84, %c0_85] : memref<6x8x128xf32, #tpu.memory_space<vmem>>, vector<1x8x128xf32>
    tpu.vector_store %arg9[%301, %c0_84, %c0_85], %300 {strides = array<i32>} : memref<6x8x128xf32, #tpu.memory_space<vmem>>, vector<1x8x128xf32>,
    %c5_i32 = arith.constant 5 : i32
    %303 = vector.broadcast %2 : vector<1x32xf32> to vector<8x32xf32>
    %304 = arith.mulf %295, %303 : vector<8x32xf32>
    %cst_86 = arith.constant dense<0.000000e+00> : vector<8xf32>
    %305 = vector.multi_reduction <add>, %304, %cst_86 [1] : vector<8x32xf32> to vector<8xf32>
    %306 = vector.shape_cast %305 : vector<8xf32> to vector<8x1xf32>
    %307 = vector.shape_cast %306 : vector<8x1xf32> to vector<1x8x1xf32>
    %308 = vector.broadcast %307 : vector<1x8x1xf32> to vector<8x8x1xf32>
    %309 = arith.addf %308, %1 : vector<8x8x1xf32>
    %cst_87 = arith.constant 0.000000e+00 : f32
    %310 = vector.broadcast %cst_87 : f32 to vector<8x8x1xf32>
    %311 = arith.maximumf %309, %310 : vector<8x8x1xf32>
    %cst_88 = arith.constant dense<0xFF800000> : vector<8x1xf32>
    %312 = vector.multi_reduction <maximumf>, %311, %cst_88 [0] : vector<8x8x1xf32> to vector<8x1xf32>
    %313 = vector.shape_cast %312 : vector<8x1xf32> to vector<1x8x1xf32>
    %314 = vector.broadcast %313 : vector<1x8x1xf32> to vector<8x8x1xf32>
    %315 = arith.subf %311, %314 : vector<8x8x1xf32>
    %316 = math.exp %315 : vector<8x8x1xf32>
    %cst_89 = arith.constant dense<0.000000e+00> : vector<8x1xf32>
    %317 = vector.multi_reduction <add>, %316, %cst_89 [0] : vector<8x8x1xf32> to vector<8x1xf32>
    %318 = vector.shape_cast %317 : vector<8x1xf32> to vector<1x8x1xf32>
    %319 = vector.broadcast %318 : vector<1x8x1xf32> to vector<8x8x1xf32>
    %320 = arith.divf %316, %319 : vector<8x8x1xf32>
    %321 = vector.broadcast %320 : vector<8x8x1xf32> to vector<8x8x64xf32>
    %322 = arith.mulf %321, %0 : vector<8x8x64xf32>
    %cst_90 = arith.constant dense<0.000000e+00> : vector<8x64xf32>
    %323 = vector.multi_reduction <add>, %322, %cst_90 [0] : vector<8x8x64xf32> to vector<8x64xf32>
    %324 = tpu.concatenate %323, %295 in 1 : vector<8x64xf32>, vector<8x32xf32> -> vector<8x96xf32>
    %cst_91 = arith.constant dense<0.000000e+00> : vector<8x128xf32>
    %325 = tpu.matmul %324, %3, %cst_91 {dimension_numbers = #tpu.dot_dimension_numbers<[1], [0], [0], [1], [0, 0, 1, 1], [], []>} : vector<8x96xf32>, vector<96x128xf32>, vector<8x128xf32> -> vector<8x128xf32>
    %326 = arith.index_cast %c5_i32 : i32 to index
    %c0_92 = arith.constant 0 : index
    %c0_93 = arith.constant 0 : index
    %327 = vector.load %arg0[%326, %c0_92, %c0_93] : memref<6x8x128xf32, #tpu.memory_space<vmem>>, vector<1x8x128xf32>
    %328 = vector.shape_cast %327 : vector<1x8x128xf32> to vector<8x128xf32>
    %329 = arith.addf %325, %328 : vector<8x128xf32>
    %330 = vector.extract_strided_slice %329 {offsets = [0, 0], sizes = [8, 32], strides = [1, 1]} : vector<8x128xf32> to vector<8x32xf32>
    %331 = arith.negf %330 : vector<8x32xf32>
    %332 = math.exp %331 : vector<8x32xf32>
    %cst_94 = arith.constant 1.000000e+00 : f32
    %333 = vector.broadcast %cst_94 : f32 to vector<8x32xf32>
    %334 = arith.addf %333, %332 : vector<8x32xf32>
    %335 = arith.divf %333, %334 : vector<8x32xf32>
    %336 = vector.extract_strided_slice %329 {offsets = [0, 32], sizes = [8, 32], strides = [1, 1]} : vector<8x128xf32> to vector<8x32xf32>
    %337 = arith.negf %336 : vector<8x32xf32>
    %338 = math.exp %337 : vector<8x32xf32>
    %cst_95 = arith.constant 1.000000e+00 : f32
    %339 = vector.broadcast %cst_95 : f32 to vector<8x32xf32>
    %340 = arith.addf %339, %338 : vector<8x32xf32>
    %341 = arith.divf %339, %340 : vector<8x32xf32>
    %342 = vector.extract_strided_slice %329 {offsets = [0, 64], sizes = [8, 32], strides = [1, 1]} : vector<8x128xf32> to vector<8x32xf32>
    %343 = math.tanh %342 : vector<8x32xf32>
    %344 = vector.extract_strided_slice %329 {offsets = [0, 96], sizes = [8, 32], strides = [1, 1]} : vector<8x128xf32> to vector<8x32xf32>
    %345 = arith.negf %344 : vector<8x32xf32>
    %346 = math.exp %345 : vector<8x32xf32>
    %cst_96 = arith.constant 1.000000e+00 : f32
    %347 = vector.broadcast %cst_96 : f32 to vector<8x32xf32>
    %348 = arith.addf %347, %346 : vector<8x32xf32>
    %349 = arith.divf %347, %348 : vector<8x32xf32>
    %350 = arith.mulf %341, %293 : vector<8x32xf32>
    %351 = arith.mulf %335, %343 : vector<8x32xf32>
    %352 = arith.addf %350, %351 : vector<8x32xf32>
    %353 = math.tanh %352 : vector<8x32xf32>
    %354 = arith.mulf %349, %353 : vector<8x32xf32>
    %cst_97 = arith.constant dense<0.000000e+00> : vector<8x96xf32>
    %355 = tpu.matmul %354, %4, %cst_97 {dimension_numbers = #tpu.dot_dimension_numbers<[1], [0], [0], [1], [0, 0, 1, 1], [], []>} : vector<8x32xf32>, vector<32x96xf32>, vector<8x96xf32> -> vector<8x96xf32>
    %356 = vector.broadcast %5 : vector<1x96xf32> to vector<8x96xf32>
    %357 = arith.addf %355, %356 : vector<8x96xf32>
    %358 = tpu.concatenate %357, %352 in 1 : vector<8x96xf32>, vector<8x32xf32> -> vector<8x128xf32>
    %359 = vector.shape_cast %358 : vector<8x128xf32> to vector<1x8x128xf32>
    %360 = arith.index_cast %c5_i32 : i32 to index
    %c0_98 = arith.constant 0 : index
    %c0_99 = arith.constant 0 : index
    %361 = vector.load %arg9[%360, %c0_98, %c0_99] : memref<6x8x128xf32, #tpu.memory_space<vmem>>, vector<1x8x128xf32>
    tpu.vector_store %arg9[%360, %c0_98, %c0_99], %359 {strides = array<i32>} : memref<6x8x128xf32, #tpu.memory_space<vmem>>, vector<1x8x128xf32>,
    %c6_i32 = arith.constant 6 : i32
    return
  }
}

</mosaic_0001>

<llo_original>
// kernel: decoder_decode.1
$region0: #{decoder_decode.1}
  #allocation0 [shape = 'u32[]', space=smem, size = 0x4, offset = 0x4, fixed_abs, tag = 'smem constant byte address 0x4 - core index']
  #allocation1 [shape = 'u32[144,128]{1,0:T(1,128)}', space=vmem, size = 0x12000, scoped, tag = 'internal scratch']
  %s0 = inlined_call_operand.vmem [shape: f32[6,8,128], index: 0, kind: input, shape index: {}]
  %s1 = inlined_call_operand.vmem [shape: f32[8,8,64], index: 1, kind: input, shape index: {}]
  %s2 = inlined_call_operand.vmem [shape: f32[8,8,1], index: 2, kind: input, shape index: {}]
  %s3 = inlined_call_operand.vmem [shape: f32[8,32], index: 3, kind: input, shape index: {}]
  %s4 = inlined_call_operand.vmem [shape: f32[8,32], index: 4, kind: input, shape index: {}]
  %s5 = inlined_call_operand.vmem [shape: f32[1,32], index: 5, kind: input, shape index: {}]
  %s6 = inlined_call_operand.vmem [shape: f32[96,128], index: 6, kind: input, shape index: {}]
  %s7 = inlined_call_operand.vmem [shape: f32[32,96], index: 7, kind: input, shape index: {}]
  %s8 = inlined_call_operand.vmem [shape: f32[1,96], index: 8, kind: input, shape index: {}]
  %s9 = inlined_call_operand.vmem [shape: f32[6,8,128], index: 9, kind: output, shape index: {}]
  %s10 = sld [smem:[#allocation0]]
  $region46: #{decoder_decode.1} parent=0
    _
  %s12 = ssub.s32 1, %s10
  %s13 = scalar_select 0, %s12, %s10
  // Predicated region
  $region2: #{decoder_decode.1} parent=0 // pred_check
    _
  $region3: #{decoder_decode.1} parent=0 // pred_check_branch
    %15 = sbr.rel (0) target = $region5
  $region4: #{decoder_decode.1} parent=0 // pred_region
    _
  $region5: #{decoder_decode.1} parent=0 // pred_fallthru
    _
  // Predicated region
  $region6: #{decoder_decode.1} parent=0 // pred_check
    _
  $region7: #{decoder_decode.1} parent=0 // pred_check_branch
    %17 = sbr.rel (0) target = $region9
  $region8: #{decoder_decode.1} parent=0 // pred_region
    _
  $region9: #{decoder_decode.1} parent=0 // pred_fallthru
    _
  // Predicated region
  $region10: #{decoder_decode.1} parent=0 // pred_check
    _
  $region11: #{decoder_decode.1} parent=0 // pred_check_branch
    %19 = sbr.rel (0) target = $region13
  $region12: #{decoder_decode.1} parent=0 // pred_region
    _
  $region13: #{decoder_decode.1} parent=0 // pred_fallthru
    _
  // Predicated region
  $region14: #{decoder_decode.1} parent=0 // pred_check
    _
  $region15: #{decoder_decode.1} parent=0 // pred_check_branch
    %21 = sbr.rel (0) target = $region17
  $region16: #{decoder_decode.1} parent=0 // pred_region
    _
  $region17: #{decoder_decode.1} parent=0 // pred_fallthru
    _
  // Predicated region
  $region18: #{decoder_decode.1} parent=0 // pred_check
    _
  $region19: #{decoder_decode.1} parent=0 // pred_check_branch
    %23 = sbr.rel (0) target = $region21
  $region20: #{decoder_decode.1} parent=0 // pred_region
    _
  $region21: #{decoder_decode.1} parent=0 // pred_fallthru
    _
  // Predicated region
  $region22: #{decoder_decode.1} parent=0 // pred_check
    _
  $region23: #{decoder_decode.1} parent=0 // pred_check_branch
    %25 = sbr.rel (0) target = $region25
  $region24: #{decoder_decode.1} parent=0 // pred_region
    _
  $region25: #{decoder_decode.1} parent=0 // pred_fallthru
    _
  // Predicated region
  $region26: #{decoder_decode.1} parent=0 // pred_check
    _
  $region27: #{decoder_decode.1} parent=0 // pred_check_branch
    %27 = sbr.rel (0) target = $region29
  $region28: #{decoder_decode.1} parent=0 // pred_region
    _
  $region29: #{decoder_decode.1} parent=0 // pred_fallthru
    _
  // Predicated region
  $region30: #{decoder_decode.1} parent=0 // pred_check
    _
  $region31: #{decoder_decode.1} parent=0 // pred_check_branch
    %29 = sbr.rel (0) target = $region33
  $region32: #{decoder_decode.1} parent=0 // pred_region
    _
  $region33: #{decoder_decode.1} parent=0 // pred_fallthru
    _
  // Predicated region
  $region34: #{decoder_decode.1} parent=0 // pred_check
    _
  $region35: #{decoder_decode.1} parent=0 // pred_check_branch
    %31 = sbr.rel (0) target = $region37
  $region36: #{decoder_decode.1} parent=0 // pred_region
    _
  $region37: #{decoder_decode.1} parent=0 // pred_fallthru
    _
  %v32 = vld [vmem:[%s1] sm:$0xff]
  %v33 = vld [vmem:[%s1 + $0x8] sm:$0xff]
  %v34 = vld [vmem:[%s1 + $0x10] sm:$0xff]
  %v35 = vld [vmem:[%s1 + $0x18] sm:$0xff]
  %v36 = vld [vmem:[%s1 + $0x20] sm:$0xff]
  %v37 = vld [vmem:[%s1 + $0x28] sm:$0xff]
  %v38 = vld [vmem:[%s1 + $0x30] sm:$0xff]
  %v39 = vld [vmem:[%s1 + $0x38] sm:$0xff]
  %v40 = vld [vmem:[%s2] sm:$0xff]
  %v41 = vld [vmem:[%s2 + $0x8] sm:$0xff]
  %v42 = vld [vmem:[%s2 + $0x10] sm:$0xff]
  %v43 = vld [vmem:[%s2 + $0x18] sm:$0xff]
  %v44 = vld [vmem:[%s2 + $0x20] sm:$0xff]
  %v45 = vld [vmem:[%s2 + $0x28] sm:$0xff]
  %v46 = vld [vmem:[%s2 + $0x30] sm:$0xff]
  %v47 = vld [vmem:[%s2 + $0x38] sm:$0xff]
  %v48 = vld [vmem:[%s5] sm:$0x1]
  %v49 = vld [vmem:[%s6] sm:$0xff]
  %v50 = vld [vmem:[%s6 + $0x8] sm:$0xff]
  %v51 = vld [vmem:[%s6 + $0x10] sm:$0xff]
  %v52 = vld [vmem:[%s6 + $0x18] sm:$0xff]
  %v53 = vld [vmem:[%s6 + $0x20] sm:$0xff]
  %v54 = vld [vmem:[%s6 + $0x28] sm:$0xff]
  %v55 = vld [vmem:[%s6 + $0x30] sm:$0xff]
  %v56 = vld [vmem:[%s6 + $0x38] sm:$0xff]
  %v57 = vld [vmem:[%s6 + $0x40] sm:$0xff]
  %v58 = vld [vmem:[%s6 + $0x48] sm:$0xff]
  %v59 = vld [vmem:[%s6 + $0x50] sm:$0xff]
  %v60 = vld [vmem:[%s6 + $0x58] sm:$0xff]
  %v61 = vld [vmem:[%s7] sm:$0xff]
  %v62 = vld [vmem:[%s7 + $0x8] sm:$0xff]
  %v63 = vld [vmem:[%s7 + $0x10] sm:$0xff]
  %v64 = vld [vmem:[%s7 + $0x18] sm:$0xff]
  %v65 = vld [vmem:[%s8] sm:$0x1]
  %v66 = vld [vmem:[%s3] sm:$0xff]
  %v67 = vld [vmem:[%s4] sm:$0xff]
  %v69 = vlaneseq
  %v70 = vshrl.u32 %v69, 7
  %v71 = vsub.s32 0, %v70
  %v72 = vrot.slane %v48, %v71
  %v74 = vmul.f32 %v66, %v72
  %vm75 = vcmask 261120
  %v76 = vsel %vm75, %v74, 0.0
  %77 = vadd.xlane.f32.xlu0 %v76
  %v78 = vpop.xlane.xlu0 %77
  %v79 = vadd.f32 %v78, %v40
  %v80 = vadd.f32 %v78, %v41
  %v81 = vadd.f32 %v78, %v42
  %v82 = vadd.f32 %v78, %v43
  %v83 = vadd.f32 %v78, %v44
  %v84 = vadd.f32 %v78, %v45
  %v85 = vadd.f32 %v78, %v46
  %v86 = vadd.f32 %v78, %v47
  %v87 = vmax.f32 %v79, 0.0
  %v88 = vmax.f32 %v80, 0.0
  %v89 = vmax.f32 %v81, 0.0
  %v90 = vmax.f32 %v82, 0.0
  %v91 = vmax.f32 %v83, 0.0
  %v92 = vmax.f32 %v84, 0.0
  %v93 = vmax.f32 %v85, 0.0
  %v94 = vmax.f32 %v86, 0.0
  %vm95 = vcmask 7168
  %v96 = vsel %vm95, %v87, -inf
  %v97 = vsel %vm95, %v88, -inf
  %v98 = vsel %vm95, %v89, -inf
  %v99 = vsel %vm95, %v90, -inf
  %v100 = vsel %vm95, %v91, -inf
  %v101 = vmax.f32 %v96, %v100
  %v102 = vsel %vm95, %v92, -inf
  %v103 = vmax.f32 %v97, %v102
  %v104 = vsel %vm95, %v93, -inf
  %v105 = vmax.f32 %v98, %v104
  %v106 = vsel %vm95, %v94, -inf
  %v107 = vmax.f32 %v99, %v106
  %v108 = vmax.f32 %v101, %v103
  %v109 = vmax.f32 %v105, %v107
  %v110 = vmax.f32 %v108, %v109
  %v111 = vsub.f32 %v87, %v110
  %v112 = vsub.f32 %v88, %v110
  %v113 = vsub.f32 %v89, %v110
  %v114 = vsub.f32 %v90, %v110
  %v115 = vsub.f32 %v91, %v110
  %v116 = vsub.f32 %v92, %v110
  %v117 = vsub.f32 %v93, %v110
  %v118 = vsub.f32 %v94, %v110
  %v119 = vmul.f32 %v111, 1.442695
  %v120 = vpow.pop %v119
  %v121 = vmul.f32 %v112, 1.442695
  %v122 = vpow.pop %v121
  %v123 = vmul.f32 %v113, 1.442695
  %v124 = vpow.pop %v123
  %v125 = vmul.f32 %v114, 1.442695
  %v126 = vpow.pop %v125
  %v127 = vmul.f32 %v115, 1.442695
  %v128 = vpow.pop %v127
  %v129 = vmul.f32 %v116, 1.442695
  %v130 = vpow.pop %v129
  %v131 = vmul.f32 %v117, 1.442695
  %v132 = vpow.pop %v131
  %v133 = vmul.f32 %v118, 1.442695
  %v134 = vpow.pop %v133
  %v135 = vsel %vm95, %v120, 0.0
  %v136 = vsel %vm95, %v122, 0.0
  %v137 = vadd.f32 %v135, %v136
  %v138 = vsel %vm95, %v124, 0.0
  %v139 = vadd.f32 %v137, %v138
  %v140 = vsel %vm95, %v126, 0.0
  %v141 = vadd.f32 %v139, %v140
  %v142 = vsel %vm95, %v128, 0.0
  %v143 = vadd.f32 %v141, %v142
  %v144 = vsel %vm95, %v130, 0.0
  %v145 = vadd.f32 %v143, %v144
  %v146 = vsel %vm95, %v132, 0.0
  %v147 = vadd.f32 %v145, %v146
  %v148 = vsel %vm95, %v134, 0.0
  %v149 = vadd.f32 %v147, %v148
  %v150 = vrcp.pop %v149
  %v151 = vmul.f32 %v120, %v150
  %v152 = vmul.f32 %v122, %v150
  %v153 = vmul.f32 %v124, %v150
  %v154 = vmul.f32 %v126, %v150
  %v155 = vmul.f32 %v128, %v150
  %v156 = vmul.f32 %v130, %v150
  %v157 = vmul.f32 %v132, %v150
  %v158 = vmul.f32 %v134, %v150
  %160 = vset.pattern.permute.xlu0 0
  %161 = vperm.xlu0 %160, %v151
  %v162 = vpop.permute.xlu0 %161
  %165 = vset.pattern.permute.xlu0 0
  %166 = vperm.xlu0 %165, %v152
  %v167 = vpop.permute.xlu0 %166
  %170 = vset.pattern.permute.xlu0 0
  %171 = vperm.xlu0 %170, %v153
  %v172 = vpop.permute.xlu0 %171
  %175 = vset.pattern.permute.xlu0 0
  %176 = vperm.xlu0 %175, %v154
  %v177 = vpop.permute.xlu0 %176
  %180 = vset.pattern.permute.xlu0 0
  %181 = vperm.xlu0 %180, %v155
  %v182 = vpop.permute.xlu0 %181
  %185 = vset.pattern.permute.xlu0 0
  %186 = vperm.xlu0 %185, %v156
  %v187 = vpop.permute.xlu0 %186
  %190 = vset.pattern.permute.xlu0 0
  %191 = vperm.xlu0 %190, %v157
  %v192 = vpop.permute.xlu0 %191
  %195 = vset.pattern.permute.xlu0 0
  %196 = vperm.xlu0 %195, %v158
  %v197 = vpop.permute.xlu0 %196
  %v199 = vmul.f32 %v162, %v32
  %v200 = vmul.f32 %v167, %v33
  %v201 = vmul.f32 %v172, %v34
  %v202 = vmul.f32 %v177, %v35
  %v203 = vmul.f32 %v182, %v36
  %v204 = vmul.f32 %v187, %v37
  %v205 = vmul.f32 %v192, %v38
  %v206 = vmul.f32 %v197, %v39
  %vm207 = vcmask 523264
  %v208 = vsel %vm207, %v199, 0.0
  %v209 = vsel %vm207, %v200, 0.0
  %v210 = vadd.f32 %v208, %v209
  %v211 = vsel %vm207, %v201, 0.0
  %v212 = vadd.f32 %v210, %v211
  %v213 = vsel %vm207, %v202, 0.0
  %v214 = vadd.f32 %v212, %v213
  %v215 = vsel %vm207, %v203, 0.0
  %v216 = vadd.f32 %v214, %v215
  %v217 = vsel %vm207, %v204, 0.0
  %v218 = vadd.f32 %v216, %v217
  %v219 = vsel %vm207, %v205, 0.0
  %v220 = vadd.f32 %v218, %v219
  %v221 = vsel %vm207, %v206, 0.0
  %v222 = vadd.f32 %v220, %v221
  %224 = vrot.lane.b32.xlu0 %v66, 64
  %v225 = vpop.permute.xlu0 %224
  %v227 = vsel %vm207, %v222, %v225
  %v228 = vld [vmem:[%s0] sm:$0xff]
  %vm229 = vcmask 785408
  %v231 = vsel %vm229, %v227, 0
  %233 = vmatprep.subr.mxu0 0.0
  %234 = vmatpush1.msra.mxu0 0.0
  %235 = vmatprep.subr.mxu0 0.0
  %236 = vmatpush1.msra.mxu0 0.0
  %237 = vmatprep.subr.mxu0 0.0
  %238 = vmatpush1.msra.mxu0 0.0
  %239 = vmatprep.subr.mxu0 0.0
  %240 = vmatpush1.msra.mxu0 0.0
  %241 = vmatprep.subr.mxu0 0.0
  %242 = vmatpush1.msra.mxu0 %v60
  %243 = vmatprep.subr.mxu0 0.0
  %244 = vmatpush1.msra.mxu0 %v59
  %245 = vmatprep.subr.mxu0 0.0
  %246 = vmatpush1.msra.mxu0 %v58
  %247 = vmatprep.subr.mxu0 0.0
  %248 = vmatpush1.msra.mxu0 %v57
  %249 = vmatprep.subr.mxu0 0.0
  %250 = vmatpush1.msra.mxu0 %v56
  %251 = vmatprep.subr.mxu0 0.0
  %252 = vmatpush1.msra.mxu0 %v55
  %253 = vmatprep.subr.mxu0 0.0
  %254 = vmatpush1.msra.mxu0 %v54
  %255 = vmatprep.subr.mxu0 0.0
  %256 = vmatpush1.msra.mxu0 %v53
  %257 = vmatprep.subr.mxu0 0.0
  %258 = vmatpush1.msra.mxu0 %v52
  %259 = vmatprep.subr.mxu0 0.0
  %260 = vmatpush1.msra.mxu0 %v51
  %261 = vmatprep.subr.mxu0 0.0
  %262 = vmatpush1.msra.mxu0 %v50
  %263 = vmatprep.subr.mxu0 0.0
  %264 = vmatpush1.msra.mxu0 %v49
  %265 = vmatprep.subr.mxu0 0.0
  %266 = vmatpush2.msra.mxu0 0.0
  %267 = vmatprep.subr.mxu0 0.0
  %268 = vmatpush2.msra.mxu0 0.0
  %269 = vmatprep.subr.mxu0 0.0
  %270 = vmatpush2.msra.mxu0 0.0
  %271 = vmatprep.subr.mxu0 0.0
  %272 = vmatpush2.msra.mxu0 0.0
  %273 = vmatprep.subr.mxu0 0.0
  %274 = vmatpush2.msra.mxu0 0.0
  %275 = vmatprep.subr.mxu0 0.0
  %276 = vmatpush2.msra.mxu0 0.0
  %277 = vmatprep.subr.mxu0 0.0
  %278 = vmatpush2.msra.mxu0 0.0
  %279 = vmatprep.subr.mxu0 0.0
  %280 = vmatpush2.msra.mxu0 0.0
  %281 = vmatprep.subr.mxu0 0.0
  %282 = vmatpush2.msra.mxu0 0.0
  %283 = vmatprep.subr.mxu0 0.0
  %284 = vmatpush2.msra.mxu0 0.0
  %285 = vmatprep.subr.mxu0 0.0
  %286 = vmatpush2.msra.mxu0 0.0
  %287 = vmatprep.subr.mxu0 0.0
  %288 = vmatpush2.msra.mxu0 0.0
  %289 = vmatprep.subr.mxu0 0.0
  %290 = vmatpush2.msra.mxu0 0.0
  %291 = vmatprep.subr.mxu0 0.0
  %292 = vmatpush2.msra.mxu0 0.0
  %293 = vmatprep.subr.mxu0 0.0
  %294 = vmatpush2.msra.mxu0 0.0
  %295 = vmatprep.subr.mxu0 0.0
  %296 = vmatpush2.msra.mxu0 0.0
  %297 = vmatprep.mubr.f32.mxu0 0.0
  %298 = vmatmul.mubr.f32.gmra.mxu0 %v231
  %v299 = vpop.f32.mrf.mxu0
  %v300 = vadd.f32 %v228, %v299
  %v301 = vpop.f32.mrf.mxu0
  %302 = vdwg.mxu0
  %v303 = vxor.u32 %v300, 2147483648
  %v304 = vmul.f32 %v303, 1.442695
  %v305 = vpow.pop %v304
  %v306 = vadd.f32 %v305, 1.0
  %v307 = vrcp.pop %v306
  %v308 = vmul.f32 1.0, %v307
  %v309 = vtanh.pop %v300
  %311 = vrot.lane.b32.xlu0 %v67, 32
  %v312 = vpop.permute.xlu0 %311
  %v314 = vmul.f32 %v308, %v312
  %316 = vrot.lane.b32.xlu0 %v309, 64
  %v317 = vpop.permute.xlu0 %316
  %v319 = vmul.f32 %v308, %v317
  %321 = vrot.lane.b32.xlu0 %v319, 32
  %v322 = vpop.permute.xlu0 %321
  %v324 = vadd.f32 %v314, %v322
  %v325 = vtanh.pop %v324
  %327 = vrot.lane.b32.xlu0 %v325, 64
  %v328 = vpop.permute.xlu0 %327
  %v330 = vmul.f32 %v308, %v328
  %v332 = vlaneseq
  %v333 = vshrl.u32 %v332, 7
  %v334 = vsub.s32 0, %v333
  %v335 = vrot.slane %v65, %v334
  %338 = vrot.lane.b32.xlu0 %v330, 32
  %v339 = vpop.permute.xlu0 %338
  %v340 = vsel %vm75, %v339, 0
  %342 = vmatprep.subr.mxu0 0.0
  %343 = vmatpush1.msra.mxu0 0.0
  %344 = vmatprep.subr.mxu0 0.0
  %345 = vmatpush1.msra.mxu0 0.0
  %346 = vmatprep.subr.mxu0 0.0
  %347 = vmatpush1.msra.mxu0 0.0
  %348 = vmatprep.subr.mxu0 0.0
  %349 = vmatpush1.msra.mxu0 0.0
  %350 = vmatprep.subr.mxu0 0.0
  %351 = vmatpush1.msra.mxu0 0.0
  %352 = vmatprep.subr.mxu0 0.0
  %353 = vmatpush1.msra.mxu0 0.0
  %354 = vmatprep.subr.mxu0 0.0
  %355 = vmatpush1.msra.mxu0 0.0
  %356 = vmatprep.subr.mxu0 0.0
  %357 = vmatpush1.msra.mxu0 0.0
  %358 = vmatprep.subr.mxu0 0.0
  %359 = vmatpush1.msra.mxu0 0.0
  %360 = vmatprep.subr.mxu0 0.0
  %361 = vmatpush1.msra.mxu0 0.0
  %362 = vmatprep.subr.mxu0 0.0
  %363 = vmatpush1.msra.mxu0 0.0
  %364 = vmatprep.subr.mxu0 0.0
  %365 = vmatpush1.msra.mxu0 0.0
  %366 = vmatprep.subr.mxu0 0.0
  %367 = vmatpush1.msra.mxu0 %v64
  %368 = vmatprep.subr.mxu0 0.0
  %369 = vmatpush1.msra.mxu0 %v63
  %370 = vmatprep.subr.mxu0 0.0
  %371 = vmatpush1.msra.mxu0 %v62
  %372 = vmatprep.subr.mxu0 0.0
  %373 = vmatpush1.msra.mxu0 %v61
  %374 = vmatprep.subr.mxu0 0.0
  %375 = vmatpush2.msra.mxu0 0.0
  %376 = vmatprep.subr.mxu0 0.0
  %377 = vmatpush2.msra.mxu0 0.0
  %378 = vmatprep.subr.mxu0 0.0
  %379 = vmatpush2.msra.mxu0 0.0
  %380 = vmatprep.subr.mxu0 0.0
  %381 = vmatpush2.msra.mxu0 0.0
  %382 = vmatprep.subr.mxu0 0.0
  %383 = vmatpush2.msra.mxu0 0.0
  %384 = vmatprep.subr.mxu0 0.0
  %385 = vmatpush2.msra.mxu0 0.0
  %386 = vmatprep.subr.mxu0 0.0
  %387 = vmatpush2.msra.mxu0 0.0
  %388 = vmatprep.subr.mxu0 0.0
  %389 = vmatpush2.msra.mxu0 0.0
  %390 = vmatprep.subr.mxu0 0.0
  %391 = vmatpush2.msra.mxu0 0.0
  %392 = vmatprep.subr.mxu0 0.0
  %393 = vmatpush2.msra.mxu0 0.0
  %394 = vmatprep.subr.mxu0 0.0
  %395 = vmatpush2.msra.mxu0 0.0
  %396 = vmatprep.subr.mxu0 0.0
  %397 = vmatpush2.msra.mxu0 0.0
  %398 = vmatprep.subr.mxu0 0.0
  %399 = vmatpush2.msra.mxu0 0.0
  %400 = vmatprep.subr.mxu0 0.0
  %401 = vmatpush2.msra.mxu0 0.0
  %402 = vmatprep.subr.mxu0 0.0
  %403 = vmatpush2.msra.mxu0 0.0
  %404 = vmatprep.subr.mxu0 0.0
  %405 = vmatpush2.msra.mxu0 0.0
  %406 = vmatprep.mubr.f32.mxu0 0.0
  %407 = vmatmul.mubr.f32.gmra.mxu0 %v340
  %v408 = vpop.f32.mrf.mxu0
  %v409 = vadd.f32 %v335, %v408
  %v410 = vpop.f32.mrf.mxu0
  %411 = vdwg.mxu0
  %413 = vrot.lane.b32.xlu0 %v324, 64
  %v414 = vpop.permute.xlu0 %413
  %v416 = vsel %vm229, %v409, %v414
  %417 = vst [vmem:[%s9] sm:$0xff] %v416
  %418 = vrot.lane.b32.xlu0 %v72, 96
  %v419 = vpop.permute.xlu0 %418
  %v421 = vmul.f32 %v330, %v419
  %423 = vrot.lane.b32.xlu0 %v421, 32
  %v424 = vpop.permute.xlu0 %423
  %v426 = vsel %vm75, %v424, 0.0
  %427 = vadd.xlane.f32.xlu0 %v426
  %v428 = vpop.xlane.xlu0 %427
  %v429 = vadd.f32 %v428, %v40
  %v430 = vadd.f32 %v428, %v41
  %v431 = vadd.f32 %v428, %v42
  %v432 = vadd.f32 %v428, %v43
  %v433 = vadd.f32 %v428, %v44
  %v434 = vadd.f32 %v428, %v45
  %v435 = vadd.f32 %v428, %v46
  %v436 = vadd.f32 %v428, %v47
  %v437 = vmax.f32 %v429, 0.0
  %v438 = vmax.f32 %v430, 0.0
  %v439 = vmax.f32 %v431, 0.0
  %v440 = vmax.f32 %v432, 0.0
  %v441 = vmax.f32 %v433, 0.0
  %v442 = vmax.f32 %v434, 0.0
  %v443 = vmax.f32 %v435, 0.0
  %v444 = vmax.f32 %v436, 0.0
  %v445 = vsel %vm95, %v437, -inf
  %v446 = vsel %vm95, %v438, -inf
  %v447 = vsel %vm95, %v439, -inf
  %v448 = vsel %vm95, %v440, -inf
  %v449 = vsel %vm95, %v441, -inf
  %v450 = vmax.f32 %v445, %v449
  %v451 = vsel %vm95, %v442, -inf
  %v452 = vmax.f32 %v446, %v451
  %v453 = vsel %vm95, %v443, -inf
  %v454 = vmax.f32 %v447, %v453
  %v455 = vsel %vm95, %v444, -inf
  %v456 = vmax.f32 %v448, %v455
  %v457 = vmax.f32 %v450, %v452
  %v458 = vmax.f32 %v454, %v456
  %v459 = vmax.f32 %v457, %v458
  %v460 = vsub.f32 %v437, %v459
  %v461 = vsub.f32 %v438, %v459
  %v462 = vsub.f32 %v439, %v459
  %v463 = vsub.f32 %v440, %v459
  %v464 = vsub.f32 %v441, %v459
  %v465 = vsub.f32 %v442, %v459
  %v466 = vsub.f32 %v443, %v459
  %v467 = vsub.f32 %v444, %v459
  %v468 = vmul.f32 %v460, 1.442695
  %v469 = vpow.pop %v468
  %v470 = vmul.f32 %v461, 1.442695
  %v471 = vpow.pop %v470
  %v472 = vmul.f32 %v462, 1.442695
  %v473 = vpow.pop %v472
  %v474 = vmul.f32 %v463, 1.442695
  %v475 = vpow.pop %v474
  %v476 = vmul.f32 %v464, 1.442695
  %v477 = vpow.pop %v476
  %v478 = vmul.f32 %v465, 1.442695
  %v479 = vpow.pop %v478
  %v480 = vmul.f32 %v466, 1.442695
  %v481 = vpow.pop %v480
  %v482 = vmul.f32 %v467, 1.442695
  %v483 = vpow.pop %v482
  %v484 = vsel %vm95, %v469, 0.0
  %v485 = vsel %vm95, %v471, 0.0
  %v486 = vadd.f32 %v484, %v485
  %v487 = vsel %vm95, %v473, 0.0
  %v488 = vadd.f32 %v486, %v487
  %v489 = vsel %vm95, %v475, 0.0
  %v490 = vadd.f32 %v488, %v489
  %v491 = vsel %vm95, %v477, 0.0
  %v492 = vadd.f32 %v490, %v491
  %v493 = vsel %vm95, %v479, 0.0
  %v494 = vadd.f32 %v492, %v493
  %v495 = vsel %vm95, %v481, 0.0
  %v496 = vadd.f32 %v494, %v495
  %v497 = vsel %vm95, %v483, 0.0
  %v498 = vadd.f32 %v496, %v497
  %v499 = vrcp.pop %v498
  %v500 = vmul.f32 %v469, %v499
  %v501 = vmul.f32 %v471, %v499
  %v502 = vmul.f32 %v473, %v499
  %v503 = vmul.f32 %v475, %v499
  %v504 = vmul.f32 %v477, %v499
  %v505 = vmul.f32 %v479, %v499
  %v506 = vmul.f32 %v481, %v499
  %v507 = vmul.f32 %v483, %v499
  %509 = vset.pattern.permute.xlu0 0
  %510 = vperm.xlu0 %509, %v500
  %v511 = vpop.permute.xlu0 %510
  %514 = vset.pattern.permute.xlu0 0
  %515 = vperm.xlu0 %514, %v501
  %v516 = vpop.permute.xlu0 %515
  %519 = vset.pattern.permute.xlu0 0
  %520 = vperm.xlu0 %519, %v502
  %v521 = vpop.permute.xlu0 %520
  %524 = vset.pattern.permute.xlu0 0
  %525 = vperm.xlu0 %524, %v503
  %v526 = vpop.permute.xlu0 %525
  %529 = vset.pattern.permute.xlu0 0
  %530 = vperm.xlu0 %529, %v504
  %v531 = vpop.permute.xlu0 %530
  %534 = vset.pattern.permute.xlu0 0
  %535 = vperm.xlu0 %534, %v505
  %v536 = vpop.permute.xlu0 %535
  %539 = vset.pattern.permute.xlu0 0
  %540 = vperm.xlu0 %539, %v506
  %v541 = vpop.permute.xlu0 %540
  %544 = vset.pattern.permute.xlu0 0
  %545 = vperm.xlu0 %544, %v507
  %v546 = vpop.permute.xlu0 %545
  %v548 = vmul.f32 %v511, %v32
  %v549 = vmul.f32 %v516, %v33
  %v550 = vmul.f32 %v521, %v34
  %v551 = vmul.f32 %v526, %v35
  %v552 = vmul.f32 %v531, %v36
  %v553 = vmul.f32 %v536, %v37
  %v554 = vmul.f32 %v541, %v38
  %v555 = vmul.f32 %v546, %v39
  %v556 = vsel %vm207, %v548, 0.0
  %v557 = vsel %vm207, %v549, 0.0
  %v558 = vadd.f32 %v556, %v557
  %v559 = vsel %vm207, %v550, 0.0
  %v560 = vadd.f32 %v558, %v559
  %v561 = vsel %vm207, %v551, 0.0
  %v562 = vadd.f32 %v560, %v561
  %v563 = vsel %vm207, %v552, 0.0
  %v564 = vadd.f32 %v562, %v563
  %v565 = vsel %vm207, %v553, 0.0
  %v566 = vadd.f32 %v564, %v565
  %v567 = vsel %vm207, %v554, 0.0
  %v568 = vadd.f32 %v566, %v567
  %v569 = vsel %vm207, %v555, 0.0
  %v570 = vadd.f32 %v568, %v569
  %571 = vrot.lane.b32.xlu0 %v330, 96
  %v572 = vpop.permute.xlu0 %571
  %v574 = vsel %vm207, %v570, %v572
  %s575 = scalar_lea.vmem %s0, 8
  %v576 = vld [vmem:[%s575] sm:$0xff]
  %v578 = vsel %vm229, %v574, 0
  %580 = vmatprep.subr.mxu0 0.0
  %581 = vmatpush1.msra.mxu0 0.0
  %582 = vmatprep.subr.mxu0 0.0
  %583 = vmatpush1.msra.mxu0 0.0
  %584 = vmatprep.subr.mxu0 0.0
  %585 = vmatpush1.msra.mxu0 0.0
  %586 = vmatprep.subr.mxu0 0.0
  %587 = vmatpush1.msra.mxu0 0.0
  %588 = vmatprep.subr.mxu0 0.0
  %589 = vmatpush1.msra.mxu0 %v60
  %590 = vmatprep.subr.mxu0 0.0
  %591 = vmatpush1.msra.mxu0 %v59
  %592 = vmatprep.subr.mxu0 0.0
  %593 = vmatpush1.msra.mxu0 %v58
  %594 = vmatprep.subr.mxu0 0.0
  %595 = vmatpush1.msra.mxu0 %v57
  %596 = vmatprep.subr.mxu0 0.0
  %597 = vmatpush1.msra.mxu0 %v56
  %598 = vmatprep.subr.mxu0 0.0
  %599 = vmatpush1.msra.mxu0 %v55
  %600 = vmatprep.subr.mxu0 0.0
  %601 = vmatpush1.msra.mxu0 %v54
  %602 = vmatprep.subr.mxu0 0.0
  %603 = vmatpush1.msra.mxu0 %v53
  %604 = vmatprep.subr.mxu0 0.0
  %605 = vmatpush1.msra.mxu0 %v52
  %606 = vmatprep.subr.mxu0 0.0
  %607 = vmatpush1.msra.mxu0 %v51
  %608 = vmatprep.subr.mxu0 0.0
  %609 = vmatpush1.msra.mxu0 %v50
  %610 = vmatprep.subr.mxu0 0.0
  %611 = vmatpush1.msra.mxu0 %v49
  %612 = vmatprep.subr.mxu0 0.0
  %613 = vmatpush2.msra.mxu0 0.0
  %614 = vmatprep.subr.mxu0 0.0
  %615 = vmatpush2.msra.mxu0 0.0
  %616 = vmatprep.subr.mxu0 0.0
  %617 = vmatpush2.msra.mxu0 0.0
  %618 = vmatprep.subr.mxu0 0.0
  %619 = vmatpush2.msra.mxu0 0.0
  %620 = vmatprep.subr.mxu0 0.0
  %621 = vmatpush2.msra.mxu0 0.0
  %622 = vmatprep.subr.mxu0 0.0
  %623 = vmatpush2.msra.mxu0 0.0
  %624 = vmatprep.subr.mxu0 0.0
  %625 = vmatpush2.msra.mxu0 0.0
  %626 = vmatprep.subr.mxu0 0.0
  %627 = vmatpush2.msra.mxu0 0.0
  %628 = vmatprep.subr.mxu0 0.0
  %629 = vmatpush2.msra.mxu0 0.0
  %630 = vmatprep.subr.mxu0 0.0
  %631 = vmatpush2.msra.mxu0 0.0
  %632 = vmatprep.subr.mxu0 0.0
  %633 = vmatpush2.msra.mxu0 0.0
  %634 = vmatprep.subr.mxu0 0.0
  %635 = vmatpush2.msra.mxu0 0.0
  %636 = vmatprep.subr.mxu0 0.0
  %637 = vmatpush2.msra.mxu0 0.0
  %638 = vmatprep.subr.mxu0 0.0
  %639 = vmatpush2.msra.mxu0 0.0
  %640 = vmatprep.subr.mxu0 0.0
  %641 = vmatpush2.msra.mxu0 0.0
  %642 = vmatprep.subr.mxu0 0.0
  %643 = vmatpush2.msra.mxu0 0.0
  %644 = vmatprep.mubr.f32.mxu0 0.0
  %645 = vmatmul.mubr.f32.gmra.mxu0 %v578
  %v646 = vpop.f32.mrf.mxu0
  %v647 = vadd.f32 %v576, %v646
  %v648 = vpop.f32.mrf.mxu0
  %649 = vdwg.mxu0
  %v650 = vxor.u32 %v647, 2147483648
  %v651 = vmul.f32 %v650, 1.442695
  %v652 = vpow.pop %v651
  %v653 = vadd.f32 %v652, 1.0
  %v654 = vrcp.pop %v653
  %v655 = vmul.f32 1.0, %v654
  %v656 = vtanh.pop %v647
  %v657 = vmul.f32 %v655, %v324
  %659 = vrot.lane.b32.xlu0 %v656, 64
  %v660 = vpop.permute.xlu0 %659
  %v662 = vmul.f32 %v655, %v660
  %664 = vrot.lane.b32.xlu0 %v662, 32
  %v665 = vpop.permute.xlu0 %664
  %v667 = vadd.f32 %v657, %v665
  %v668 = vtanh.pop %v667
  %670 = vrot.lane.b32.xlu0 %v668, 64
  %v671 = vpop.permute.xlu0 %670
  %v673 = vmul.f32 %v655, %v671
  %675 = vrot.lane.b32.xlu0 %v673, 32
  %v676 = vpop.permute.xlu0 %675
  %v677 = vsel %vm75, %v676, 0
  %679 = vmatprep.subr.mxu0 0.0
  %680 = vmatpush1.msra.mxu0 0.0
  %681 = vmatprep.subr.mxu0 0.0
  %682 = vmatpush1.msra.mxu0 0.0
  %683 = vmatprep.subr.mxu0 0.0
  %684 = vmatpush1.msra.mxu0 0.0
  %685 = vmatprep.subr.mxu0 0.0
  %686 = vmatpush1.msra.mxu0 0.0
  %687 = vmatprep.subr.mxu0 0.0
  %688 = vmatpush1.msra.mxu0 0.0
  %689 = vmatprep.subr.mxu0 0.0
  %690 = vmatpush1.msra.mxu0 0.0
  %691 = vmatprep.subr.mxu0 0.0
  %692 = vmatpush1.msra.mxu0 0.0
  %693 = vmatprep.subr.mxu0 0.0
  %694 = vmatpush1.msra.mxu0 0.0
  %695 = vmatprep.subr.mxu0 0.0
  %696 = vmatpush1.msra.mxu0 0.0
  %697 = vmatprep.subr.mxu0 0.0
  %698 = vmatpush1.msra.mxu0 0.0
  %699 = vmatprep.subr.mxu0 0.0
  %700 = vmatpush1.msra.mxu0 0.0
  %701 = vmatprep.subr.mxu0 0.0
  %702 = vmatpush1.msra.mxu0 0.0
  %703 = vmatprep.subr.mxu0 0.0
  %704 = vmatpush1.msra.mxu0 %v64
  %705 = vmatprep.subr.mxu0 0.0
  %706 = vmatpush1.msra.mxu0 %v63
  %707 = vmatprep.subr.mxu0 0.0
  %708 = vmatpush1.msra.mxu0 %v62
  %709 = vmatprep.subr.mxu0 0.0
  %710 = vmatpush1.msra.mxu0 %v61
  %711 = vmatprep.subr.mxu0 0.0
  %712 = vmatpush2.msra.mxu0 0.0
  %713 = vmatprep.subr.mxu0 0.0
  %714 = vmatpush2.msra.mxu0 0.0
  %715 = vmatprep.subr.mxu0 0.0
  %716 = vmatpush2.msra.mxu0 0.0
  %717 = vmatprep.subr.mxu0 0.0
  %718 = vmatpush2.msra.mxu0 0.0
  %719 = vmatprep.subr.mxu0 0.0
  %720 = vmatpush2.msra.mxu0 0.0
  %721 = vmatprep.subr.mxu0 0.0
  %722 = vmatpush2.msra.mxu0 0.0
  %723 = vmatprep.subr.mxu0 0.0
  %724 = vmatpush2.msra.mxu0 0.0
  %725 = vmatprep.subr.mxu0 0.0
  %726 = vmatpush2.msra.mxu0 0.0
  %727 = vmatprep.subr.mxu0 0.0
  %728 = vmatpush2.msra.mxu0 0.0
  %729 = vmatprep.subr.mxu0 0.0
  %730 = vmatpush2.msra.mxu0 0.0
  %731 = vmatprep.subr.mxu0 0.0
  %732 = vmatpush2.msra.mxu0 0.0
  %733 = vmatprep.subr.mxu0 0.0
  %734 = vmatpush2.msra.mxu0 0.0
  %735 = vmatprep.subr.mxu0 0.0
  %736 = vmatpush2.msra.mxu0 0.0
  %737 = vmatprep.subr.mxu0 0.0
  %738 = vmatpush2.msra.mxu0 0.0
  %739 = vmatprep.subr.mxu0 0.0
  %740 = vmatpush2.msra.mxu0 0.0
  %741 = vmatprep.subr.mxu0 0.0
  %742 = vmatpush2.msra.mxu0 0.0
  %743 = vmatprep.mubr.f32.mxu0 0.0
  %744 = vmatmul.mubr.f32.gmra.mxu0 %v677
  %v745 = vpop.f32.mrf.mxu0
  %v746 = vadd.f32 %v335, %v745
  %v747 = vpop.f32.mrf.mxu0
  %748 = vdwg.mxu0
  %750 = vrot.lane.b32.xlu0 %v667, 64
  %v751 = vpop.permute.xlu0 %750
  %v753 = vsel %vm229, %v746, %v751
  %s754 = scalar_lea.vmem %s9, 8
  %755 = vst [vmem:[%s754] sm:$0xff] %v753
  %v756 = vmul.f32 %v673, %v419
  %758 = vrot.lane.b32.xlu0 %v756, 32
  %v759 = vpop.permute.xlu0 %758
  %v761 = vsel %vm75, %v759, 0.0
  %762 = vadd.xlane.f32.xlu0 %v761
  %v763 = vpop.xlane.xlu0 %762
  %v764 = vadd.f32 %v763, %v40
  %v765 = vadd.f32 %v763, %v41
  %v766 = vadd.f32 %v763, %v42
  %v767 = vadd.f32 %v763, %v43
  %v768 = vadd.f32 %v763, %v44
  %v769 = vadd.f32 %v763, %v45
  %v770 = vadd.f32 %v763, %v46
  %v771 = vadd.f32 %v763, %v47
  %v772 = vmax.f32 %v764, 0.0
  %v773 = vmax.f32 %v765, 0.0
  %v774 = vmax.f32 %v766, 0.0
  %v775 = vmax.f32 %v767, 0.0
  %v776 = vmax.f32 %v768, 0.0
  %v777 = vmax.f32 %v769, 0.0
  %v778 = vmax.f32 %v770, 0.0
  %v779 = vmax.f32 %v771, 0.0
  %v780 = vsel %vm95, %v772, -inf
  %v781 = vsel %vm95, %v773, -inf
  %v782 = vsel %vm95, %v774, -inf
  %v783 = vsel %vm95, %v775, -inf
  %v784 = vsel %vm95, %v776, -inf
  %v785 = vmax.f32 %v780, %v784
  %v786 = vsel %vm95, %v777, -inf
  %v787 = vmax.f32 %v781, %v786
  %v788 = vsel %vm95, %v778, -inf
  %v789 = vmax.f32 %v782, %v788
  %v790 = vsel %vm95, %v779, -inf
  %v791 = vmax.f32 %v783, %v790
  %v792 = vmax.f32 %v785, %v787
  %v793 = vmax.f32 %v789, %v791
  %v794 = vmax.f32 %v792, %v793
  %v795 = vsub.f32 %v772, %v794
  %v796 = vsub.f32 %v773, %v794
  %v797 = vsub.f32 %v774, %v794
  %v798 = vsub.f32 %v775, %v794
  %v799 = vsub.f32 %v776, %v794
  %v800 = vsub.f32 %v777, %v794
  %v801 = vsub.f32 %v778, %v794
  %v802 = vsub.f32 %v779, %v794
  %v803 = vmul.f32 %v795, 1.442695
  %v804 = vpow.pop %v803
  %v805 = vmul.f32 %v796, 1.442695
  %v806 = vpow.pop %v805
  %v807 = vmul.f32 %v797, 1.442695
  %v808 = vpow.pop %v807
  %v809 = vmul.f32 %v798, 1.442695
  %v810 = vpow.pop %v809
  %v811 = vmul.f32 %v799, 1.442695
  %v812 = vpow.pop %v811
  %v813 = vmul.f32 %v800, 1.442695
  %v814 = vpow.pop %v813
  %v815 = vmul.f32 %v801, 1.442695
  %v816 = vpow.pop %v815
  %v817 = vmul.f32 %v802, 1.442695
  %v818 = vpow.pop %v817
  %v819 = vsel %vm95, %v804, 0.0
  %v820 = vsel %vm95, %v806, 0.0
  %v821 = vadd.f32 %v819, %v820
  %v822 = vsel %vm95, %v808, 0.0
  %v823 = vadd.f32 %v821, %v822
  %v824 = vsel %vm95, %v810, 0.0
  %v825 = vadd.f32 %v823, %v824
  %v826 = vsel %vm95, %v812, 0.0
  %v827 = vadd.f32 %v825, %v826
  %v828 = vsel %vm95, %v814, 0.0
  %v829 = vadd.f32 %v827, %v828
  %v830 = vsel %vm95, %v816, 0.0
  %v831 = vadd.f32 %v829, %v830
  %v832 = vsel %vm95, %v818, 0.0
  %v833 = vadd.f32 %v831, %v832
  %v834 = vrcp.pop %v833
  %v835 = vmul.f32 %v804, %v834
  %v836 = vmul.f32 %v806, %v834
  %v837 = vmul.f32 %v808, %v834
  %v838 = vmul.f32 %v810, %v834
  %v839 = vmul.f32 %v812, %v834
  %v840 = vmul.f32 %v814, %v834
  %v841 = vmul.f32 %v816, %v834
  %v842 = vmul.f32 %v818, %v834
  %844 = vset.pattern.permute.xlu0 0
  %845 = vperm.xlu0 %844, %v835
  %v846 = vpop.permute.xlu0 %845
  %849 = vset.pattern.permute.xlu0 0
  %850 = vperm.xlu0 %849, %v836
  %v851 = vpop.permute.xlu0 %850
  %854 = vset.pattern.permute.xlu0 0
  %855 = vperm.xlu0 %854, %v837
  %v856 = vpop.permute.xlu0 %855
  %859 = vset.pattern.permute.xlu0 0
  %860 = vperm.xlu0 %859, %v838
  %v861 = vpop.permute.xlu0 %860
  %864 = vset.pattern.permute.xlu0 0
  %865 = vperm.xlu0 %864, %v839
  %v866 = vpop.permute.xlu0 %865
  %869 = vset.pattern.permute.xlu0 0
  %870 = vperm.xlu0 %869, %v840
  %v871 = vpop.permute.xlu0 %870
  %874 = vset.pattern.permute.xlu0 0
  %875 = vperm.xlu0 %874, %v841
  %v876 = vpop.permute.xlu0 %875
  %879 = vset.pattern.permute.xlu0 0
  %880 = vperm.xlu0 %879, %v842
  %v881 = vpop.permute.xlu0 %880
  %v883 = vmul.f32 %v846, %v32
  %v884 = vmul.f32 %v851, %v33
  %v885 = vmul.f32 %v856, %v34
  %v886 = vmul.f32 %v861, %v35
  %v887 = vmul.f32 %v866, %v36
  %v888 = vmul.f32 %v871, %v37
  %v889 = vmul.f32 %v876, %v38
  %v890 = vmul.f32 %v881, %v39
  %v891 = vsel %vm207, %v883, 0.0
  %v892 = vsel %vm207, %v884, 0.0
  %v893 = vadd.f32 %v891, %v892
  %v894 = vsel %vm207, %v885, 0.0
  %v895 = vadd.f32 %v893, %v894
  %v896 = vsel %vm207, %v886, 0.0
  %v897 = vadd.f32 %v895, %v896
  %v898 = vsel %vm207, %v887, 0.0
  %v899 = vadd.f32 %v897, %v898
  %v900 = vsel %vm207, %v888, 0.0
  %v901 = vadd.f32 %v899, %v900
  %v902 = vsel %vm207, %v889, 0.0
  %v903 = vadd.f32 %v901, %v902
  %v904 = vsel %vm207, %v890, 0.0
  %v905 = vadd.f32 %v903, %v904
  %906 = vrot.lane.b32.xlu0 %v673, 96
  %v907 = vpop.permute.xlu0 %906
  %v909 = vsel %vm207, %v905, %v907
  %s910 = scalar_lea.vmem %s0, 16
  %v911 = vld [vmem:[%s910] sm:$0xff]
  %v913 = vsel %vm229, %v909, 0
  %915 = vmatprep.subr.mxu0 0.0
  %916 = vmatpush1.msra.mxu0 0.0
  %917 = vmatprep.subr.mxu0 0.0
  %918 = vmatpush1.msra.mxu0 0.0
  %919 = vmatprep.subr.mxu0 0.0
  %920 = vmatpush1.msra.mxu0 0.0
  %921 = vmatprep.subr.mxu0 0.0
  %922 = vmatpush1.msra.mxu0 0.0
  %923 = vmatprep.subr.mxu0 0.0
  %924 = vmatpush1.msra.mxu0 %v60
  %925 = vmatprep.subr.mxu0 0.0
  %926 = vmatpush1.msra.mxu0 %v59
  %927 = vmatprep.subr.mxu0 0.0
  %928 = vmatpush1.msra.mxu0 %v58
  %929 = vmatprep.subr.mxu0 0.0
  %930 = vmatpush1.msra.mxu0 %v57
  %931 = vmatprep.subr.mxu0 0.0
  %932 = vmatpush1.msra.mxu0 %v56
  %933 = vmatprep.subr.mxu0 0.0
  %934 = vmatpush1.msra.mxu0 %v55
  %935 = vmatprep.subr.mxu0 0.0
  %936 = vmatpush1.msra.mxu0 %v54
  %937 = vmatprep.subr.mxu0 0.0
  %938 = vmatpush1.msra.mxu0 %v53
  %939 = vmatprep.subr.mxu0 0.0
  %940 = vmatpush1.msra.mxu0 %v52
  %941 = vmatprep.subr.mxu0 0.0
  %942 = vmatpush1.msra.mxu0 %v51
  %943 = vmatprep.subr.mxu0 0.0
  %944 = vmatpush1.msra.mxu0 %v50
  %945 = vmatprep.subr.mxu0 0.0
  %946 = vmatpush1.msra.mxu0 %v49
  %947 = vmatprep.subr.mxu0 0.0
  %948 = vmatpush2.msra.mxu0 0.0
  %949 = vmatprep.subr.mxu0 0.0
  %950 = vmatpush2.msra.mxu0 0.0
  %951 = vmatprep.subr.mxu0 0.0
  %952 = vmatpush2.msra.mxu0 0.0
  %953 = vmatprep.subr.mxu0 0.0
  %954 = vmatpush2.msra.mxu0 0.0
  %955 = vmatprep.subr.mxu0 0.0
  %956 = vmatpush2.msra.mxu0 0.0
  %957 = vmatprep.subr.mxu0 0.0
  %958 = vmatpush2.msra.mxu0 0.0
  %959 = vmatprep.subr.mxu0 0.0
  %960 = vmatpush2.msra.mxu0 0.0
  %961 = vmatprep.subr.mxu0 0.0
  %962 = vmatpush2.msra.mxu0 0.0
  %963 = vmatprep.subr.mxu0 0.0
  %964 = vmatpush2.msra.mxu0 0.0
  %965 = vmatprep.subr.mxu0 0.0
  %966 = vmatpush2.msra.mxu0 0.0
  %967 = vmatprep.subr.mxu0 0.0
  %968 = vmatpush2.msra.mxu0 0.0
  %969 = vmatprep.subr.mxu0 0.0
  %970 = vmatpush2.msra.mxu0 0.0
  %971 = vmatprep.subr.mxu0 0.0
  %972 = vmatpush2.msra.mxu0 0.0
  %973 = vmatprep.subr.mxu0 0.0
  %974 = vmatpush2.msra.mxu0 0.0
  %975 = vmatprep.subr.mxu0 0.0
  %976 = vmatpush2.msra.mxu0 0.0
  %977 = vmatprep.subr.mxu0 0.0
  %978 = vmatpush2.msra.mxu0 0.0
  %979 = vmatprep.mubr.f32.mxu0 0.0
  %980 = vmatmul.mubr.f32.gmra.mxu0 %v913
  %v981 = vpop.f32.mrf.mxu0
  %v982 = vadd.f32 %v911, %v981
  %v983 = vpop.f32.mrf.mxu0
  %984 = vdwg.mxu0
  %v985 = vxor.u32 %v982, 2147483648
  %v986 = vmul.f32 %v985, 1.442695
  %v987 = vpow.pop %v986
  %v988 = vadd.f32 %v987, 1.0
  %v989 = vrcp.pop %v988
  %v990 = vmul.f32 1.0, %v989
  %v991 = vtanh.pop %v982
  %v992 = vmul.f32 %v990, %v667
  %994 = vrot.lane.b32.xlu0 %v991, 64
  %v995 = vpop.permute.xlu0 %994
  %v997 = vmul.f32 %v990, %v995
  %999 = vrot.lane.b32.xlu0 %v997, 32
  %v1000 = vpop.permute.xlu0 %999
  %v1002 = vadd.f32 %v992, %v1000
  %v1003 = vtanh.pop %v1002
  %1005 = vrot.lane.b32.xlu0 %v1003, 64
  %v1006 = vpop.permute.xlu0 %1005
  %v1008 = vmul.f32 %v990, %v1006
  %1010 = vrot.lane.b32.xlu0 %v1008, 32
  %v1011 = vpop.permute.xlu0 %1010
  %v1012 = vsel %vm75, %v1011, 0
  %1014 = vmatprep.subr.mxu0 0.0
  %1015 = vmatpush1.msra.mxu0 0.0
  %1016 = vmatprep.subr.mxu0 0.0
  %1017 = vmatpush1.msra.mxu0 0.0
  %1018 = vmatprep.subr.mxu0 0.0
  %1019 = vmatpush1.msra.mxu0 0.0
  %1020 = vmatprep.subr.mxu0 0.0
  %1021 = vmatpush1.msra.mxu0 0.0
  %1022 = vmatprep.subr.mxu0 0.0
  %1023 = vmatpush1.msra.mxu0 0.0
  %1024 = vmatprep.subr.mxu0 0.0
  %1025 = vmatpush1.msra.mxu0 0.0
  %1026 = vmatprep.subr.mxu0 0.0
  %1027 = vmatpush1.msra.mxu0 0.0
  %1028 = vmatprep.subr.mxu0 0.0
  %1029 = vmatpush1.msra.mxu0 0.0
  %1030 = vmatprep.subr.mxu0 0.0
  %1031 = vmatpush1.msra.mxu0 0.0
  %1032 = vmatprep.subr.mxu0 0.0
  %1033 = vmatpush1.msra.mxu0 0.0
  %1034 = vmatprep.subr.mxu0 0.0
  %1035 = vmatpush1.msra.mxu0 0.0
  %1036 = vmatprep.subr.mxu0 0.0
  %1037 = vmatpush1.msra.mxu0 0.0
  %1038 = vmatprep.subr.mxu0 0.0
  %1039 = vmatpush1.msra.mxu0 %v64
  %1040 = vmatprep.subr.mxu0 0.0
  %1041 = vmatpush1.msra.mxu0 %v63
  %1042 = vmatprep.subr.mxu0 0.0
  %1043 = vmatpush1.msra.mxu0 %v62
  %1044 = vmatprep.subr.mxu0 0.0
  %1045 = vmatpush1.msra.mxu0 %v61
  %1046 = vmatprep.subr.mxu0 0.0
  %1047 = vmatpush2.msra.mxu0 0.0
  %1048 = vmatprep.subr.mxu0 0.0
  %1049 = vmatpush2.msra.mxu0 0.0
  %1050 = vmatprep.subr.mxu0 0.0
  %1051 = vmatpush2.msra.mxu0 0.0
  %1052 = vmatprep.subr.mxu0 0.0
  %1053 = vmatpush2.msra.mxu0 0.0
  %1054 = vmatprep.subr.mxu0 0.0
  %1055 = vmatpush2.msra.mxu0 0.0
  %1056 = vmatprep.subr.mxu0 0.0
  %1057 = vmatpush2.msra.mxu0 0.0
  %1058 = vmatprep.subr.mxu0 0.0
  %1059 = vmatpush2.msra.mxu0 0.0
  %1060 = vmatprep.subr.mxu0 0.0
  %1061 = vmatpush2.msra.mxu0 0.0
  %1062 = vmatprep.subr.mxu0 0.0
  %1063 = vmatpush2.msra.mxu0 0.0
  %1064 = vmatprep.subr.mxu0 0.0
  %1065 = vmatpush2.msra.mxu0 0.0
  %1066 = vmatprep.subr.mxu0 0.0
  %1067 = vmatpush2.msra.mxu0 0.0
  %1068 = vmatprep.subr.mxu0 0.0
  %1069 = vmatpush2.msra.mxu0 0.0
  %1070 = vmatprep.subr.mxu0 0.0
  %1071 = vmatpush2.msra.mxu0 0.0
  %1072 = vmatprep.subr.mxu0 0.0
  %1073 = vmatpush2.msra.mxu0 0.0
  %1074 = vmatprep.subr.mxu0 0.0
  %1075 = vmatpush2.msra.mxu0 0.0
  %1076 = vmatprep.subr.mxu0 0.0
  %1077 = vmatpush2.msra.mxu0 0.0
  %1078 = vmatprep.mubr.f32.mxu0 0.0
  %1079 = vmatmul.mubr.f32.gmra.mxu0 %v1012
  %v1080 = vpop.f32.mrf.mxu0
  %v1081 = vadd.f32 %v335, %v1080
  %v1082 = vpop.f32.mrf.mxu0
  %1083 = vdwg.mxu0
  %1085 = vrot.lane.b32.xlu0 %v1002, 64
  %v1086 = vpop.permute.xlu0 %1085
  %v1088 = vsel %vm229, %v1081, %v1086
  %s1089 = scalar_lea.vmem %s9, 16
  %1090 = vst [vmem:[%s1089] sm:$0xff] %v1088
  %v1091 = vmul.f32 %v1008, %v419
  %1093 = vrot.lane.b32.xlu0 %v1091, 32
  %v1094 = vpop.permute.xlu0 %1093
  %v1096 = vsel %vm75, %v1094, 0.0
  %1097 = vadd.xlane.f32.xlu0 %v1096
  %v1098 = vpop.xlane.xlu0 %1097
  %v1099 = vadd.f32 %v1098, %v40
  %v1100 = vadd.f32 %v1098, %v41
  %v1101 = vadd.f32 %v1098, %v42
  %v1102 = vadd.f32 %v1098, %v43
  %v1103 = vadd.f32 %v1098, %v44
  %v1104 = vadd.f32 %v1098, %v45
  %v1105 = vadd.f32 %v1098, %v46
  %v1106 = vadd.f32 %v1098, %v47
  %v1107 = vmax.f32 %v1099, 0.0
  %v1108 = vmax.f32 %v1100, 0.0
  %v1109 = vmax.f32 %v1101, 0.0
  %v1110 = vmax.f32 %v1102, 0.0
  %v1111 = vmax.f32 %v1103, 0.0
  %v1112 = vmax.f32 %v1104, 0.0
  %v1113 = vmax.f32 %v1105, 0.0
  %v1114 = vmax.f32 %v1106, 0.0
  %v1115 = vsel %vm95, %v1107, -inf
  %v1116 = vsel %vm95, %v1108, -inf
  %v1117 = vsel %vm95, %v1109, -inf
  %v1118 = vsel %vm95, %v1110, -inf
  %v1119 = vsel %vm95, %v1111, -inf
  %v1120 = vmax.f32 %v1115, %v1119
  %v1121 = vsel %vm95, %v1112, -inf
  %v1122 = vmax.f32 %v1116, %v1121
  %v1123 = vsel %vm95, %v1113, -inf
  %v1124 = vmax.f32 %v1117, %v1123
  %v1125 = vsel %vm95, %v1114, -inf
  %v1126 = vmax.f32 %v1118, %v1125
  %v1127 = vmax.f32 %v1120, %v1122
  %v1128 = vmax.f32 %v1124, %v1126
  %v1129 = vmax.f32 %v1127, %v1128
  %v1130 = vsub.f32 %v1107, %v1129
  %v1131 = vsub.f32 %v1108, %v1129
  %v1132 = vsub.f32 %v1109, %v1129
  %v1133 = vsub.f32 %v1110, %v1129
  %v1134 = vsub.f32 %v1111, %v1129
  %v1135 = vsub.f32 %v1112, %v1129
  %v1136 = vsub.f32 %v1113, %v1129
  %v1137 = vsub.f32 %v1114, %v1129
  %v1138 = vmul.f32 %v1130, 1.442695
  %v1139 = vpow.pop %v1138
  %v1140 = vmul.f32 %v1131, 1.442695
  %v1141 = vpow.pop %v1140
  %v1142 = vmul.f32 %v1132, 1.442695
  %v1143 = vpow.pop %v1142
  %v1144 = vmul.f32 %v1133, 1.442695
  %v1145 = vpow.pop %v1144
  %v1146 = vmul.f32 %v1134, 1.442695
  %v1147 = vpow.pop %v1146
  %v1148 = vmul.f32 %v1135, 1.442695
  %v1149 = vpow.pop %v1148
  %v1150 = vmul.f32 %v1136, 1.442695
  %v1151 = vpow.pop %v1150
  %v1152 = vmul.f32 %v1137, 1.442695
  %v1153 = vpow.pop %v1152
  %v1154 = vsel %vm95, %v1139, 0.0
  %v1155 = vsel %vm95, %v1141, 0.0
  %v1156 = vadd.f32 %v1154, %v1155
  %v1157 = vsel %vm95, %v1143, 0.0
  %v1158 = vadd.f32 %v1156, %v1157
  %v1159 = vsel %vm95, %v1145, 0.0
  %v1160 = vadd.f32 %v1158, %v1159
  %v1161 = vsel %vm95, %v1147, 0.0
  %v1162 = vadd.f32 %v1160, %v1161
  %v1163 = vsel %vm95, %v1149, 0.0
  %v1164 = vadd.f32 %v1162, %v1163
  %v1165 = vsel %vm95, %v1151, 0.0
  %v1166 = vadd.f32 %v1164, %v1165
  %v1167 = vsel %vm95, %v1153, 0.0
  %v1168 = vadd.f32 %v1166, %v1167
  %v1169 = vrcp.pop %v1168
  %v1170 = vmul.f32 %v1139, %v1169
  %v1171 = vmul.f32 %v1141, %v1169
  %v1172 = vmul.f32 %v1143, %v1169
  %v1173 = vmul.f32 %v1145, %v1169
  %v1174 = vmul.f32 %v1147, %v1169
  %v1175 = vmul.f32 %v1149, %v1169
  %v1176 = vmul.f32 %v1151, %v1169
  %v1177 = vmul.f32 %v1153, %v1169
  %1179 = vset.pattern.permute.xlu0 0
  %1180 = vperm.xlu0 %1179, %v1170
  %v1181 = vpop.permute.xlu0 %1180
  %1184 = vset.pattern.permute.xlu0 0
  %1185 = vperm.xlu0 %1184, %v1171
  %v1186 = vpop.permute.xlu0 %1185
  %1189 = vset.pattern.permute.xlu0 0
  %1190 = vperm.xlu0 %1189, %v1172
  %v1191 = vpop.permute.xlu0 %1190
  %1194 = vset.pattern.permute.xlu0 0
  %1195 = vperm.xlu0 %1194, %v1173
  %v1196 = vpop.permute.xlu0 %1195
  %1199 = vset.pattern.permute.xlu0 0
  %1200 = vperm.xlu0 %1199, %v1174
  %v1201 = vpop.permute.xlu0 %1200
  %1204 = vset.pattern.permute.xlu0 0
  %1205 = vperm.xlu0 %1204, %v1175
  %v1206 = vpop.permute.xlu0 %1205
  %1209 = vset.pattern.permute.xlu0 0
  %1210 = vperm.xlu0 %1209, %v1176
  %v1211 = vpop.permute.xlu0 %1210
  %1214 = vset.pattern.permute.xlu0 0
  %1215 = vperm.xlu0 %1214, %v1177
  %v1216 = vpop.permute.xlu0 %1215
  %v1218 = vmul.f32 %v1181, %v32
  %v1219 = vmul.f32 %v1186, %v33
  %v1220 = vmul.f32 %v1191, %v34
  %v1221 = vmul.f32 %v1196, %v35
  %v1222 = vmul.f32 %v1201, %v36
  %v1223 = vmul.f32 %v1206, %v37
  %v1224 = vmul.f32 %v1211, %v38
  %v1225 = vmul.f32 %v1216, %v39
  %v1226 = vsel %vm207, %v1218, 0.0
  %v1227 = vsel %vm207, %v1219, 0.0
  %v1228 = vadd.f32 %v1226, %v1227
  %v1229 = vsel %vm207, %v1220, 0.0
  %v1230 = vadd.f32 %v1228, %v1229
  %v1231 = vsel %vm207, %v1221, 0.0
  %v1232 = vadd.f32 %v1230, %v1231
  %v1233 = vsel %vm207, %v1222, 0.0
  %v1234 = vadd.f32 %v1232, %v1233
  %v1235 = vsel %vm207, %v1223, 0.0
  %v1236 = vadd.f32 %v1234, %v1235
  %v1237 = vsel %vm207, %v1224, 0.0
  %v1238 = vadd.f32 %v1236, %v1237
  %v1239 = vsel %vm207, %v1225, 0.0
  %v1240 = vadd.f32 %v1238, %v1239
  %1241 = vrot.lane.b32.xlu0 %v1008, 96
  %v1242 = vpop.permute.xlu0 %1241
  %v1244 = vsel %vm207, %v1240, %v1242
  %s1245 = scalar_lea.vmem %s0, 24
  %v1246 = vld [vmem:[%s1245] sm:$0xff]
  %v1248 = vsel %vm229, %v1244, 0
  %1250 = vmatprep.subr.mxu0 0.0
  %1251 = vmatpush1.msra.mxu0 0.0
  %1252 = vmatprep.subr.mxu0 0.0
  %1253 = vmatpush1.msra.mxu0 0.0
  %1254 = vmatprep.subr.mxu0 0.0
  %1255 = vmatpush1.msra.mxu0 0.0
  %1256 = vmatprep.subr.mxu0 0.0
  %1257 = vmatpush1.msra.mxu0 0.0
  %1258 = vmatprep.subr.mxu0 0.0
  %1259 = vmatpush1.msra.mxu0 %v60
  %1260 = vmatprep.subr.mxu0 0.0
  %1261 = vmatpush1.msra.mxu0 %v59
  %1262 = vmatprep.subr.mxu0 0.0
  %1263 = vmatpush1.msra.mxu0 %v58
  %1264 = vmatprep.subr.mxu0 0.0
  %1265 = vmatpush1.msra.mxu0 %v57
  %1266 = vmatprep.subr.mxu0 0.0
  %1267 = vmatpush1.msra.mxu0 %v56
  %1268 = vmatprep.subr.mxu0 0.0
  %1269 = vmatpush1.msra.mxu0 %v55
  %1270 = vmatprep.subr.mxu0 0.0
  %1271 = vmatpush1.msra.mxu0 %v54
  %1272 = vmatprep.subr.mxu0 0.0
  %1273 = vmatpush1.msra.mxu0 %v53
  %1274 = vmatprep.subr.mxu0 0.0
  %1275 = vmatpush1.msra.mxu0 %v52
  %1276 = vmatprep.subr.mxu0 0.0
  %1277 = vmatpush1.msra.mxu0 %v51
  %1278 = vmatprep.subr.mxu0 0.0
  %1279 = vmatpush1.msra.mxu0 %v50
  %1280 = vmatprep.subr.mxu0 0.0
  %1281 = vmatpush1.msra.mxu0 %v49
  %1282 = vmatprep.subr.mxu0 0.0
  %1283 = vmatpush2.msra.mxu0 0.0
  %1284 = vmatprep.subr.mxu0 0.0
  %1285 = vmatpush2.msra.mxu0 0.0
  %1286 = vmatprep.subr.mxu0 0.0
  %1287 = vmatpush2.msra.mxu0 0.0
  %1288 = vmatprep.subr.mxu0 0.0
  %1289 = vmatpush2.msra.mxu0 0.0
  %1290 = vmatprep.subr.mxu0 0.0
  %1291 = vmatpush2.msra.mxu0 0.0
  %1292 = vmatprep.subr.mxu0 0.0
  %1293 = vmatpush2.msra.mxu0 0.0
  %1294 = vmatprep.subr.mxu0 0.0
  %1295 = vmatpush2.msra.mxu0 0.0
  %1296 = vmatprep.subr.mxu0 0.0
  %1297 = vmatpush2.msra.mxu0 0.0
  %1298 = vmatprep.subr.mxu0 0.0
  %1299 = vmatpush2.msra.mxu0 0.0
  %1300 = vmatprep.subr.mxu0 0.0
  %1301 = vmatpush2.msra.mxu0 0.0
  %1302 = vmatprep.subr.mxu0 0.0
  %1303 = vmatpush2.msra.mxu0 0.0
  %1304 = vmatprep.subr.mxu0 0.0
  %1305 = vmatpush2.msra.mxu0 0.0
  %1306 = vmatprep.subr.mxu0 0.0
  %1307 = vmatpush2.msra.mxu0 0.0
  %1308 = vmatprep.subr.mxu0 0.0
  %1309 = vmatpush2.msra.mxu0 0.0
  %1310 = vmatprep.subr.mxu0 0.0
  %1311 = vmatpush2.msra.mxu0 0.0
  %1312 = vmatprep.subr.mxu0 0.0
  %1313 = vmatpush2.msra.mxu0 0.0
  %1314 = vmatprep.mubr.f32.mxu0 0.0
  %1315 = vmatmul.mubr.f32.gmra.mxu0 %v1248
  %v1316 = vpop.f32.mrf.mxu0
  %v1317 = vadd.f32 %v1246, %v1316
  %v1318 = vpop.f32.mrf.mxu0
  %1319 = vdwg.mxu0
  %v1320 = vxor.u32 %v1317, 2147483648
  %v1321 = vmul.f32 %v1320, 1.442695
  %v1322 = vpow.pop %v1321
  %v1323 = vadd.f32 %v1322, 1.0
  %v1324 = vrcp.pop %v1323
  %v1325 = vmul.f32 1.0, %v1324
  %v1326 = vtanh.pop %v1317
  %v1327 = vmul.f32 %v1325, %v1002
  %1329 = vrot.lane.b32.xlu0 %v1326, 64
  %v1330 = vpop.permute.xlu0 %1329
  %v1332 = vmul.f32 %v1325, %v1330
  %1334 = vrot.lane.b32.xlu0 %v1332, 32
  %v1335 = vpop.permute.xlu0 %1334
  %v1337 = vadd.f32 %v1327, %v1335
  %v1338 = vtanh.pop %v1337
  %1340 = vrot.lane.b32.xlu0 %v1338, 64
  %v1341 = vpop.permute.xlu0 %1340
  %v1343 = vmul.f32 %v1325, %v1341
  %1345 = vrot.lane.b32.xlu0 %v1343, 32
  %v1346 = vpop.permute.xlu0 %1345
  %v1347 = vsel %vm75, %v1346, 0
  %1349 = vmatprep.subr.mxu0 0.0
  %1350 = vmatpush1.msra.mxu0 0.0
  %1351 = vmatprep.subr.mxu0 0.0
  %1352 = vmatpush1.msra.mxu0 0.0
  %1353 = vmatprep.subr.mxu0 0.0
  %1354 = vmatpush1.msra.mxu0 0.0
  %1355 = vmatprep.subr.mxu0 0.0
  %1356 = vmatpush1.msra.mxu0 0.0
  %1357 = vmatprep.subr.mxu0 0.0
  %1358 = vmatpush1.msra.mxu0 0.0
  %1359 = vmatprep.subr.mxu0 0.0
  %1360 = vmatpush1.msra.mxu0 0.0
  %1361 = vmatprep.subr.mxu0 0.0
  %1362 = vmatpush1.msra.mxu0 0.0
  %1363 = vmatprep.subr.mxu0 0.0
  %1364 = vmatpush1.msra.mxu0 0.0
  %1365 = vmatprep.subr.mxu0 0.0
  %1366 = vmatpush1.msra.mxu0 0.0
  %1367 = vmatprep.subr.mxu0 0.0
  %1368 = vmatpush1.msra.mxu0 0.0
  %1369 = vmatprep.subr.mxu0 0.0
  %1370 = vmatpush1.msra.mxu0 0.0
  %1371 = vmatprep.subr.mxu0 0.0
  %1372 = vmatpush1.msra.mxu0 0.0
  %1373 = vmatprep.subr.mxu0 0.0
  %1374 = vmatpush1.msra.mxu0 %v64
  %1375 = vmatprep.subr.mxu0 0.0
  %1376 = vmatpush1.msra.mxu0 %v63
  %1377 = vmatprep.subr.mxu0 0.0
  %1378 = vmatpush1.msra.mxu0 %v62
  %1379 = vmatprep.subr.mxu0 0.0
  %1380 = vmatpush1.msra.mxu0 %v61
  %1381 = vmatprep.subr.mxu0 0.0
  %1382 = vmatpush2.msra.mxu0 0.0
  %1383 = vmatprep.subr.mxu0 0.0
  %1384 = vmatpush2.msra.mxu0 0.0
  %1385 = vmatprep.subr.mxu0 0.0
  %1386 = vmatpush2.msra.mxu0 0.0
  %1387 = vmatprep.subr.mxu0 0.0
  %1388 = vmatpush2.msra.mxu0 0.0
  %1389 = vmatprep.subr.mxu0 0.0
  %1390 = vmatpush2.msra.mxu0 0.0
  %1391 = vmatprep.subr.mxu0 0.0
  %1392 = vmatpush2.msra.mxu0 0.0
  %1393 = vmatprep.subr.mxu0 0.0
  %1394 = vmatpush2.msra.mxu0 0.0
  %1395 = vmatprep.subr.mxu0 0.0
  %1396 = vmatpush2.msra.mxu0 0.0
  %1397 = vmatprep.subr.mxu0 0.0
  %1398 = vmatpush2.msra.mxu0 0.0
  %1399 = vmatprep.subr.mxu0 0.0
  %1400 = vmatpush2.msra.mxu0 0.0
  %1401 = vmatprep.subr.mxu0 0.0
  %1402 = vmatpush2.msra.mxu0 0.0
  %1403 = vmatprep.subr.mxu0 0.0
  %1404 = vmatpush2.msra.mxu0 0.0
  %1405 = vmatprep.subr.mxu0 0.0
  %1406 = vmatpush2.msra.mxu0 0.0
  %1407 = vmatprep.subr.mxu0 0.0
  %1408 = vmatpush2.msra.mxu0 0.0
  %1409 = vmatprep.subr.mxu0 0.0
  %1410 = vmatpush2.msra.mxu0 0.0
  %1411 = vmatprep.subr.mxu0 0.0
  %1412 = vmatpush2.msra.mxu0 0.0
  %1413 = vmatprep.mubr.f32.mxu0 0.0
  %1414 = vmatmul.mubr.f32.gmra.mxu0 %v1347
  %v1415 = vpop.f32.mrf.mxu0
  %v1416 = vadd.f32 %v335, %v1415
  %v1417 = vpop.f32.mrf.mxu0
  %1418 = vdwg.mxu0
  %1420 = vrot.lane.b32.xlu0 %v1337, 64
  %v1421 = vpop.permute.xlu0 %1420
  %v1423 = vsel %vm229, %v1416, %v1421
  %s1424 = scalar_lea.vmem %s9, 24
  %1425 = vst [vmem:[%s1424] sm:$0xff] %v1423
  %v1426 = vmul.f32 %v1343, %v419
  %1428 = vrot.lane.b32.xlu0 %v1426, 32
  %v1429 = vpop.permute.xlu0 %1428
  %v1431 = vsel %vm75, %v1429, 0.0
  %1432 = vadd.xlane.f32.xlu0 %v1431
  %v1433 = vpop.xlane.xlu0 %1432
  %v1434 = vadd.f32 %v1433, %v40
  %v1435 = vadd.f32 %v1433, %v41
  %v1436 = vadd.f32 %v1433, %v42
  %v1437 = vadd.f32 %v1433, %v43
  %v1438 = vadd.f32 %v1433, %v44
  %v1439 = vadd.f32 %v1433, %v45
  %v1440 = vadd.f32 %v1433, %v46
  %v1441 = vadd.f32 %v1433, %v47
  %v1442 = vmax.f32 %v1434, 0.0
  %v1443 = vmax.f32 %v1435, 0.0
  %v1444 = vmax.f32 %v1436, 0.0
  %v1445 = vmax.f32 %v1437, 0.0
  %v1446 = vmax.f32 %v1438, 0.0
  %v1447 = vmax.f32 %v1439, 0.0
  %v1448 = vmax.f32 %v1440, 0.0
  %v1449 = vmax.f32 %v1441, 0.0
  %v1450 = vsel %vm95, %v1442, -inf
  %v1451 = vsel %vm95, %v1443, -inf
  %v1452 = vsel %vm95, %v1444, -inf
  %v1453 = vsel %vm95, %v1445, -inf
  %v1454 = vsel %vm95, %v1446, -inf
  %v1455 = vmax.f32 %v1450, %v1454
  %v1456 = vsel %vm95, %v1447, -inf
  %v1457 = vmax.f32 %v1451, %v1456
  %v1458 = vsel %vm95, %v1448, -inf
  %v1459 = vmax.f32 %v1452, %v1458
  %v1460 = vsel %vm95, %v1449, -inf
  %v1461 = vmax.f32 %v1453, %v1460
  %v1462 = vmax.f32 %v1455, %v1457
  %v1463 = vmax.f32 %v1459, %v1461
  %v1464 = vmax.f32 %v1462, %v1463
  %v1465 = vsub.f32 %v1442, %v1464
  %v1466 = vsub.f32 %v1443, %v1464
  %v1467 = vsub.f32 %v1444, %v1464
  %v1468 = vsub.f32 %v1445, %v1464
  %v1469 = vsub.f32 %v1446, %v1464
  %v1470 = vsub.f32 %v1447, %v1464
  %v1471 = vsub.f32 %v1448, %v1464
  %v1472 = vsub.f32 %v1449, %v1464
  %v1473 = vmul.f32 %v1465, 1.442695
  %v1474 = vpow.pop %v1473
  %v1475 = vmul.f32 %v1466, 1.442695
  %v1476 = vpow.pop %v1475
  %v1477 = vmul.f32 %v1467, 1.442695
  %v1478 = vpow.pop %v1477
  %v1479 = vmul.f32 %v1468, 1.442695
  %v1480 = vpow.pop %v1479
  %v1481 = vmul.f32 %v1469, 1.442695
  %v1482 = vpow.pop %v1481
  %v1483 = vmul.f32 %v1470, 1.442695
  %v1484 = vpow.pop %v1483
  %v1485 = vmul.f32 %v1471, 1.442695
  %v1486 = vpow.pop %v1485
  %v1487 = vmul.f32 %v1472, 1.442695
  %v1488 = vpow.pop %v1487
  %v1489 = vsel %vm95, %v1474, 0.0
  %v1490 = vsel %vm95, %v1476, 0.0
  %v1491 = vadd.f32 %v1489, %v1490
  %v1492 = vsel %vm95, %v1478, 0.0
  %v1493 = vadd.f32 %v1491, %v1492
  %v1494 = vsel %vm95, %v1480, 0.0
  %v1495 = vadd.f32 %v1493, %v1494
  %v1496 = vsel %vm95, %v1482, 0.0
  %v1497 = vadd.f32 %v1495, %v1496
  %v1498 = vsel %vm95, %v1484, 0.0
  %v1499 = vadd.f32 %v1497, %v1498
  %v1500 = vsel %vm95, %v1486, 0.0
  %v1501 = vadd.f32 %v1499, %v1500
  %v1502 = vsel %vm95, %v1488, 0.0
  %v1503 = vadd.f32 %v1501, %v1502
  %v1504 = vrcp.pop %v1503
  %v1505 = vmul.f32 %v1474, %v1504
  %v1506 = vmul.f32 %v1476, %v1504
  %v1507 = vmul.f32 %v1478, %v1504
  %v1508 = vmul.f32 %v1480, %v1504
  %v1509 = vmul.f32 %v1482, %v1504
  %v1510 = vmul.f32 %v1484, %v1504
  %v1511 = vmul.f32 %v1486, %v1504
  %v1512 = vmul.f32 %v1488, %v1504
  %1514 = vset.pattern.permute.xlu0 0
  %1515 = vperm.xlu0 %1514, %v1505
  %v1516 = vpop.permute.xlu0 %1515
  %1519 = vset.pattern.permute.xlu0 0
  %1520 = vperm.xlu0 %1519, %v1506
  %v1521 = vpop.permute.xlu0 %1520
  %1524 = vset.pattern.permute.xlu0 0
  %1525 = vperm.xlu0 %1524, %v1507
  %v1526 = vpop.permute.xlu0 %1525
  %1529 = vset.pattern.permute.xlu0 0
  %1530 = vperm.xlu0 %1529, %v1508
  %v1531 = vpop.permute.xlu0 %1530
  %1534 = vset.pattern.permute.xlu0 0
  %1535 = vperm.xlu0 %1534, %v1509
  %v1536 = vpop.permute.xlu0 %1535
  %1539 = vset.pattern.permute.xlu0 0
  %1540 = vperm.xlu0 %1539, %v1510
  %v1541 = vpop.permute.xlu0 %1540
  %1544 = vset.pattern.permute.xlu0 0
  %1545 = vperm.xlu0 %1544, %v1511
  %v1546 = vpop.permute.xlu0 %1545
  %1549 = vset.pattern.permute.xlu0 0
  %1550 = vperm.xlu0 %1549, %v1512
  %v1551 = vpop.permute.xlu0 %1550
  %v1553 = vmul.f32 %v1516, %v32
  %v1554 = vmul.f32 %v1521, %v33
  %v1555 = vmul.f32 %v1526, %v34
  %v1556 = vmul.f32 %v1531, %v35
  %v1557 = vmul.f32 %v1536, %v36
  %v1558 = vmul.f32 %v1541, %v37
  %v1559 = vmul.f32 %v1546, %v38
  %v1560 = vmul.f32 %v1551, %v39
  %v1561 = vsel %vm207, %v1553, 0.0
  %v1562 = vsel %vm207, %v1554, 0.0
  %v1563 = vadd.f32 %v1561, %v1562
  %v1564 = vsel %vm207, %v1555, 0.0
  %v1565 = vadd.f32 %v1563, %v1564
  %v1566 = vsel %vm207, %v1556, 0.0
  %v1567 = vadd.f32 %v1565, %v1566
  %v1568 = vsel %vm207, %v1557, 0.0
  %v1569 = vadd.f32 %v1567, %v1568
  %v1570 = vsel %vm207, %v1558, 0.0
  %v1571 = vadd.f32 %v1569, %v1570
  %v1572 = vsel %vm207, %v1559, 0.0
  %v1573 = vadd.f32 %v1571, %v1572
  %v1574 = vsel %vm207, %v1560, 0.0
  %v1575 = vadd.f32 %v1573, %v1574
  %1576 = vrot.lane.b32.xlu0 %v1343, 96
  %v1577 = vpop.permute.xlu0 %1576
  %v1579 = vsel %vm207, %v1575, %v1577
  %s1580 = scalar_lea.vmem %s0, 32
  %v1581 = vld [vmem:[%s1580] sm:$0xff]
  %v1583 = vsel %vm229, %v1579, 0
  %1585 = vmatprep.subr.mxu0 0.0
  %1586 = vmatpush1.msra.mxu0 0.0
  %1587 = vmatprep.subr.mxu0 0.0
  %1588 = vmatpush1.msra.mxu0 0.0
  %1589 = vmatprep.subr.mxu0 0.0
  %1590 = vmatpush1.msra.mxu0 0.0
  %1591 = vmatprep.subr.mxu0 0.0
  %1592 = vmatpush1.msra.mxu0 0.0
  %1593 = vmatprep.subr.mxu0 0.0
  %1594 = vmatpush1.msra.mxu0 %v60
  %1595 = vmatprep.subr.mxu0 0.0
  %1596 = vmatpush1.msra.mxu0 %v59
  %1597 = vmatprep.subr.mxu0 0.0
  %1598 = vmatpush1.msra.mxu0 %v58
  %1599 = vmatprep.subr.mxu0 0.0
  %1600 = vmatpush1.msra.mxu0 %v57
  %1601 = vmatprep.subr.mxu0 0.0
  %1602 = vmatpush1.msra.mxu0 %v56
  %1603 = vmatprep.subr.mxu0 0.0
  %1604 = vmatpush1.msra.mxu0 %v55
  %1605 = vmatprep.subr.mxu0 0.0
  %1606 = vmatpush1.msra.mxu0 %v54
  %1607 = vmatprep.subr.mxu0 0.0
  %1608 = vmatpush1.msra.mxu0 %v53
  %1609 = vmatprep.subr.mxu0 0.0
  %1610 = vmatpush1.msra.mxu0 %v52
  %1611 = vmatprep.subr.mxu0 0.0
  %1612 = vmatpush1.msra.mxu0 %v51
  %1613 = vmatprep.subr.mxu0 0.0
  %1614 = vmatpush1.msra.mxu0 %v50
  %1615 = vmatprep.subr.mxu0 0.0
  %1616 = vmatpush1.msra.mxu0 %v49
  %1617 = vmatprep.subr.mxu0 0.0
  %1618 = vmatpush2.msra.mxu0 0.0
  %1619 = vmatprep.subr.mxu0 0.0
  %1620 = vmatpush2.msra.mxu0 0.0
  %1621 = vmatprep.subr.mxu0 0.0
  %1622 = vmatpush2.msra.mxu0 0.0
  %1623 = vmatprep.subr.mxu0 0.0
  %1624 = vmatpush2.msra.mxu0 0.0
  %1625 = vmatprep.subr.mxu0 0.0
  %1626 = vmatpush2.msra.mxu0 0.0
  %1627 = vmatprep.subr.mxu0 0.0
  %1628 = vmatpush2.msra.mxu0 0.0
  %1629 = vmatprep.subr.mxu0 0.0
  %1630 = vmatpush2.msra.mxu0 0.0
  %1631 = vmatprep.subr.mxu0 0.0
  %1632 = vmatpush2.msra.mxu0 0.0
  %1633 = vmatprep.subr.mxu0 0.0
  %1634 = vmatpush2.msra.mxu0 0.0
  %1635 = vmatprep.subr.mxu0 0.0
  %1636 = vmatpush2.msra.mxu0 0.0
  %1637 = vmatprep.subr.mxu0 0.0
  %1638 = vmatpush2.msra.mxu0 0.0
  %1639 = vmatprep.subr.mxu0 0.0
  %1640 = vmatpush2.msra.mxu0 0.0
  %1641 = vmatprep.subr.mxu0 0.0
  %1642 = vmatpush2.msra.mxu0 0.0
  %1643 = vmatprep.subr.mxu0 0.0
  %1644 = vmatpush2.msra.mxu0 0.0
  %1645 = vmatprep.subr.mxu0 0.0
  %1646 = vmatpush2.msra.mxu0 0.0
  %1647 = vmatprep.subr.mxu0 0.0
  %1648 = vmatpush2.msra.mxu0 0.0
  %1649 = vmatprep.mubr.f32.mxu0 0.0
  %1650 = vmatmul.mubr.f32.gmra.mxu0 %v1583
  %v1651 = vpop.f32.mrf.mxu0
  %v1652 = vadd.f32 %v1581, %v1651
  %v1653 = vpop.f32.mrf.mxu0
  %1654 = vdwg.mxu0
  %v1655 = vxor.u32 %v1652, 2147483648
  %v1656 = vmul.f32 %v1655, 1.442695
  %v1657 = vpow.pop %v1656
  %v1658 = vadd.f32 %v1657, 1.0
  %v1659 = vrcp.pop %v1658
  %v1660 = vmul.f32 1.0, %v1659
  %v1661 = vtanh.pop %v1652
  %v1662 = vmul.f32 %v1660, %v1337
  %1664 = vrot.lane.b32.xlu0 %v1661, 64
  %v1665 = vpop.permute.xlu0 %1664
  %v1667 = vmul.f32 %v1660, %v1665
  %1669 = vrot.lane.b32.xlu0 %v1667, 32
  %v1670 = vpop.permute.xlu0 %1669
  %v1672 = vadd.f32 %v1662, %v1670
  %v1673 = vtanh.pop %v1672
  %1675 = vrot.lane.b32.xlu0 %v1673, 64
  %v1676 = vpop.permute.xlu0 %1675
  %v1678 = vmul.f32 %v1660, %v1676
  %1680 = vrot.lane.b32.xlu0 %v1678, 32
  %v1681 = vpop.permute.xlu0 %1680
  %v1682 = vsel %vm75, %v1681, 0
  %1684 = vmatprep.subr.mxu0 0.0
  %1685 = vmatpush1.msra.mxu0 0.0
  %1686 = vmatprep.subr.mxu0 0.0
  %1687 = vmatpush1.msra.mxu0 0.0
  %1688 = vmatprep.subr.mxu0 0.0
  %1689 = vmatpush1.msra.mxu0 0.0
  %1690 = vmatprep.subr.mxu0 0.0
  %1691 = vmatpush1.msra.mxu0 0.0
  %1692 = vmatprep.subr.mxu0 0.0
  %1693 = vmatpush1.msra.mxu0 0.0
  %1694 = vmatprep.subr.mxu0 0.0
  %1695 = vmatpush1.msra.mxu0 0.0
  %1696 = vmatprep.subr.mxu0 0.0
  %1697 = vmatpush1.msra.mxu0 0.0
  %1698 = vmatprep.subr.mxu0 0.0
  %1699 = vmatpush1.msra.mxu0 0.0
  %1700 = vmatprep.subr.mxu0 0.0
  %1701 = vmatpush1.msra.mxu0 0.0
  %1702 = vmatprep.subr.mxu0 0.0
  %1703 = vmatpush1.msra.mxu0 0.0
  %1704 = vmatprep.subr.mxu0 0.0
  %1705 = vmatpush1.msra.mxu0 0.0
  %1706 = vmatprep.subr.mxu0 0.0
  %1707 = vmatpush1.msra.mxu0 0.0
  %1708 = vmatprep.subr.mxu0 0.0
  %1709 = vmatpush1.msra.mxu0 %v64
  %1710 = vmatprep.subr.mxu0 0.0
  %1711 = vmatpush1.msra.mxu0 %v63
  %1712 = vmatprep.subr.mxu0 0.0
  %1713 = vmatpush1.msra.mxu0 %v62
  %1714 = vmatprep.subr.mxu0 0.0
  %1715 = vmatpush1.msra.mxu0 %v61
  %1716 = vmatprep.subr.mxu0 0.0
  %1717 = vmatpush2.msra.mxu0 0.0
  %1718 = vmatprep.subr.mxu0 0.0
  %1719 = vmatpush2.msra.mxu0 0.0
  %1720 = vmatprep.subr.mxu0 0.0
  %1721 = vmatpush2.msra.mxu0 0.0
  %1722 = vmatprep.subr.mxu0 0.0
  %1723 = vmatpush2.msra.mxu0 0.0
  %1724 = vmatprep.subr.mxu0 0.0
  %1725 = vmatpush2.msra.mxu0 0.0
  %1726 = vmatprep.subr.mxu0 0.0
  %1727 = vmatpush2.msra.mxu0 0.0
  %1728 = vmatprep.subr.mxu0 0.0
  %1729 = vmatpush2.msra.mxu0 0.0
  %1730 = vmatprep.subr.mxu0 0.0
  %1731 = vmatpush2.msra.mxu0 0.0
  %1732 = vmatprep.subr.mxu0 0.0
  %1733 = vmatpush2.msra.mxu0 0.0
  %1734 = vmatprep.subr.mxu0 0.0
  %1735 = vmatpush2.msra.mxu0 0.0
  %1736 = vmatprep.subr.mxu0 0.0
  %1737 = vmatpush2.msra.mxu0 0.0
  %1738 = vmatprep.subr.mxu0 0.0
  %1739 = vmatpush2.msra.mxu0 0.0
  %1740 = vmatprep.subr.mxu0 0.0
  %1741 = vmatpush2.msra.mxu0 0.0
  %1742 = vmatprep.subr.mxu0 0.0
  %1743 = vmatpush2.msra.mxu0 0.0
  %1744 = vmatprep.subr.mxu0 0.0
  %1745 = vmatpush2.msra.mxu0 0.0
  %1746 = vmatprep.subr.mxu0 0.0
  %1747 = vmatpush2.msra.mxu0 0.0
  %1748 = vmatprep.mubr.f32.mxu0 0.0
  %1749 = vmatmul.mubr.f32.gmra.mxu0 %v1682
  %v1750 = vpop.f32.mrf.mxu0
  %v1751 = vadd.f32 %v335, %v1750
  %v1752 = vpop.f32.mrf.mxu0
  %1753 = vdwg.mxu0
  %1755 = vrot.lane.b32.xlu0 %v1672, 64
  %v1756 = vpop.permute.xlu0 %1755
  %v1758 = vsel %vm229, %v1751, %v1756
  %s1759 = scalar_lea.vmem %s9, 32
  %1760 = vst [vmem:[%s1759] sm:$0xff] %v1758
  %v1761 = vmul.f32 %v1678, %v419
  %1763 = vrot.lane.b32.xlu0 %v1761, 32
  %v1764 = vpop.permute.xlu0 %1763
  %v1766 = vsel %vm75, %v1764, 0.0
  %1767 = vadd.xlane.f32.xlu0 %v1766
  %v1768 = vpop.xlane.xlu0 %1767
  %v1769 = vadd.f32 %v1768, %v40
  %v1770 = vadd.f32 %v1768, %v41
  %v1771 = vadd.f32 %v1768, %v42
  %v1772 = vadd.f32 %v1768, %v43
  %v1773 = vadd.f32 %v1768, %v44
  %v1774 = vadd.f32 %v1768, %v45
  %v1775 = vadd.f32 %v1768, %v46
  %v1776 = vadd.f32 %v1768, %v47
  %v1777 = vmax.f32 %v1769, 0.0
  %v1778 = vmax.f32 %v1770, 0.0
  %v1779 = vmax.f32 %v1771, 0.0
  %v1780 = vmax.f32 %v1772, 0.0
  %v1781 = vmax.f32 %v1773, 0.0
  %v1782 = vmax.f32 %v1774, 0.0
  %v1783 = vmax.f32 %v1775, 0.0
  %v1784 = vmax.f32 %v1776, 0.0
  %v1785 = vsel %vm95, %v1777, -inf
  %v1786 = vsel %vm95, %v1778, -inf
  %v1787 = vsel %vm95, %v1779, -inf
  %v1788 = vsel %vm95, %v1780, -inf
  %v1789 = vsel %vm95, %v1781, -inf
  %v1790 = vmax.f32 %v1785, %v1789
  %v1791 = vsel %vm95, %v1782, -inf
  %v1792 = vmax.f32 %v1786, %v1791
  %v1793 = vsel %vm95, %v1783, -inf
  %v1794 = vmax.f32 %v1787, %v1793
  %v1795 = vsel %vm95, %v1784, -inf
  %v1796 = vmax.f32 %v1788, %v1795
  %v1797 = vmax.f32 %v1790, %v1792
  %v1798 = vmax.f32 %v1794, %v1796
  %v1799 = vmax.f32 %v1797, %v1798
  %v1800 = vsub.f32 %v1777, %v1799
  %v1801 = vsub.f32 %v1778, %v1799
  %v1802 = vsub.f32 %v1779, %v1799
  %v1803 = vsub.f32 %v1780, %v1799
  %v1804 = vsub.f32 %v1781, %v1799
  %v1805 = vsub.f32 %v1782, %v1799
  %v1806 = vsub.f32 %v1783, %v1799
  %v1807 = vsub.f32 %v1784, %v1799
  %v1808 = vmul.f32 %v1800, 1.442695
  %v1809 = vpow.pop %v1808
  %v1810 = vmul.f32 %v1801, 1.442695
  %v1811 = vpow.pop %v1810
  %v1812 = vmul.f32 %v1802, 1.442695
  %v1813 = vpow.pop %v1812
  %v1814 = vmul.f32 %v1803, 1.442695
  %v1815 = vpow.pop %v1814
  %v1816 = vmul.f32 %v1804, 1.442695
  %v1817 = vpow.pop %v1816
  %v1818 = vmul.f32 %v1805, 1.442695
  %v1819 = vpow.pop %v1818
  %v1820 = vmul.f32 %v1806, 1.442695
  %v1821 = vpow.pop %v1820
  %v1822 = vmul.f32 %v1807, 1.442695
  %v1823 = vpow.pop %v1822
  %v1824 = vsel %vm95, %v1809, 0.0
  %v1825 = vsel %vm95, %v1811, 0.0
  %v1826 = vadd.f32 %v1824, %v1825
  %v1827 = vsel %vm95, %v1813, 0.0
  %v1828 = vadd.f32 %v1826, %v1827
  %v1829 = vsel %vm95, %v1815, 0.0
  %v1830 = vadd.f32 %v1828, %v1829
  %v1831 = vsel %vm95, %v1817, 0.0
  %v1832 = vadd.f32 %v1830, %v1831
  %v1833 = vsel %vm95, %v1819, 0.0
  %v1834 = vadd.f32 %v1832, %v1833
  %v1835 = vsel %vm95, %v1821, 0.0
  %v1836 = vadd.f32 %v1834, %v1835
  %v1837 = vsel %vm95, %v1823, 0.0
  %v1838 = vadd.f32 %v1836, %v1837
  %v1839 = vrcp.pop %v1838
  %v1840 = vmul.f32 %v1809, %v1839
  %v1841 = vmul.f32 %v1811, %v1839
  %v1842 = vmul.f32 %v1813, %v1839
  %v1843 = vmul.f32 %v1815, %v1839
  %v1844 = vmul.f32 %v1817, %v1839
  %v1845 = vmul.f32 %v1819, %v1839
  %v1846 = vmul.f32 %v1821, %v1839
  %v1847 = vmul.f32 %v1823, %v1839
  %1849 = vset.pattern.permute.xlu0 0
  %1850 = vperm.xlu0 %1849, %v1840
  %v1851 = vpop.permute.xlu0 %1850
  %1854 = vset.pattern.permute.xlu0 0
  %1855 = vperm.xlu0 %1854, %v1841
  %v1856 = vpop.permute.xlu0 %1855
  %1859 = vset.pattern.permute.xlu0 0
  %1860 = vperm.xlu0 %1859, %v1842
  %v1861 = vpop.permute.xlu0 %1860
  %1864 = vset.pattern.permute.xlu0 0
  %1865 = vperm.xlu0 %1864, %v1843
  %v1866 = vpop.permute.xlu0 %1865
  %1869 = vset.pattern.permute.xlu0 0
  %1870 = vperm.xlu0 %1869, %v1844
  %v1871 = vpop.permute.xlu0 %1870
  %1874 = vset.pattern.permute.xlu0 0
  %1875 = vperm.xlu0 %1874, %v1845
  %v1876 = vpop.permute.xlu0 %1875
  %1879 = vset.pattern.permute.xlu0 0
  %1880 = vperm.xlu0 %1879, %v1846
  %v1881 = vpop.permute.xlu0 %1880
  %1884 = vset.pattern.permute.xlu0 0
  %1885 = vperm.xlu0 %1884, %v1847
  %v1886 = vpop.permute.xlu0 %1885
  %v1888 = vmul.f32 %v1851, %v32
  %v1889 = vmul.f32 %v1856, %v33
  %v1890 = vmul.f32 %v1861, %v34
  %v1891 = vmul.f32 %v1866, %v35
  %v1892 = vmul.f32 %v1871, %v36
  %v1893 = vmul.f32 %v1876, %v37
  %v1894 = vmul.f32 %v1881, %v38
  %v1895 = vmul.f32 %v1886, %v39
  %v1896 = vsel %vm207, %v1888, 0.0
  %v1897 = vsel %vm207, %v1889, 0.0
  %v1898 = vadd.f32 %v1896, %v1897
  %v1899 = vsel %vm207, %v1890, 0.0
  %v1900 = vadd.f32 %v1898, %v1899
  %v1901 = vsel %vm207, %v1891, 0.0
  %v1902 = vadd.f32 %v1900, %v1901
  %v1903 = vsel %vm207, %v1892, 0.0
  %v1904 = vadd.f32 %v1902, %v1903
  %v1905 = vsel %vm207, %v1893, 0.0
  %v1906 = vadd.f32 %v1904, %v1905
  %v1907 = vsel %vm207, %v1894, 0.0
  %v1908 = vadd.f32 %v1906, %v1907
  %v1909 = vsel %vm207, %v1895, 0.0
  %v1910 = vadd.f32 %v1908, %v1909
  %1911 = vrot.lane.b32.xlu0 %v1678, 96
  %v1912 = vpop.permute.xlu0 %1911
  %v1914 = vsel %vm207, %v1910, %v1912
  %s1915 = scalar_lea.vmem %s0, 40
  %v1916 = vld [vmem:[%s1915] sm:$0xff]
  %v1918 = vsel %vm229, %v1914, 0
  %1920 = vmatprep.subr.mxu0 0.0
  %1921 = vmatpush1.msra.mxu0 0.0
  %1922 = vmatprep.subr.mxu0 0.0
  %1923 = vmatpush1.msra.mxu0 0.0
  %1924 = vmatprep.subr.mxu0 0.0
  %1925 = vmatpush1.msra.mxu0 0.0
  %1926 = vmatprep.subr.mxu0 0.0
  %1927 = vmatpush1.msra.mxu0 0.0
  %1928 = vmatprep.subr.mxu0 0.0
  %1929 = vmatpush1.msra.mxu0 %v60
  %1930 = vmatprep.subr.mxu0 0.0
  %1931 = vmatpush1.msra.mxu0 %v59
  %1932 = vmatprep.subr.mxu0 0.0
  %1933 = vmatpush1.msra.mxu0 %v58
  %1934 = vmatprep.subr.mxu0 0.0
  %1935 = vmatpush1.msra.mxu0 %v57
  %1936 = vmatprep.subr.mxu0 0.0
  %1937 = vmatpush1.msra.mxu0 %v56
  %1938 = vmatprep.subr.mxu0 0.0
  %1939 = vmatpush1.msra.mxu0 %v55
  %1940 = vmatprep.subr.mxu0 0.0
  %1941 = vmatpush1.msra.mxu0 %v54
  %1942 = vmatprep.subr.mxu0 0.0
  %1943 = vmatpush1.msra.mxu0 %v53
  %1944 = vmatprep.subr.mxu0 0.0
  %1945 = vmatpush1.msra.mxu0 %v52
  %1946 = vmatprep.subr.mxu0 0.0
  %1947 = vmatpush1.msra.mxu0 %v51
  %1948 = vmatprep.subr.mxu0 0.0
  %1949 = vmatpush1.msra.mxu0 %v50
  %1950 = vmatprep.subr.mxu0 0.0
  %1951 = vmatpush1.msra.mxu0 %v49
  %1952 = vmatprep.subr.mxu0 0.0
  %1953 = vmatpush2.msra.mxu0 0.0
  %1954 = vmatprep.subr.mxu0 0.0
  %1955 = vmatpush2.msra.mxu0 0.0
  %1956 = vmatprep.subr.mxu0 0.0
  %1957 = vmatpush2.msra.mxu0 0.0
  %1958 = vmatprep.subr.mxu0 0.0
  %1959 = vmatpush2.msra.mxu0 0.0
  %1960 = vmatprep.subr.mxu0 0.0
  %1961 = vmatpush2.msra.mxu0 0.0
  %1962 = vmatprep.subr.mxu0 0.0
  %1963 = vmatpush2.msra.mxu0 0.0
  %1964 = vmatprep.subr.mxu0 0.0
  %1965 = vmatpush2.msra.mxu0 0.0
  %1966 = vmatprep.subr.mxu0 0.0
  %1967 = vmatpush2.msra.mxu0 0.0
  %1968 = vmatprep.subr.mxu0 0.0
  %1969 = vmatpush2.msra.mxu0 0.0
  %1970 = vmatprep.subr.mxu0 0.0
  %1971 = vmatpush2.msra.mxu0 0.0
  %1972 = vmatprep.subr.mxu0 0.0
  %1973 = vmatpush2.msra.mxu0 0.0
  %1974 = vmatprep.subr.mxu0 0.0
  %1975 = vmatpush2.msra.mxu0 0.0
  %1976 = vmatprep.subr.mxu0 0.0
  %1977 = vmatpush2.msra.mxu0 0.0
  %1978 = vmatprep.subr.mxu0 0.0
  %1979 = vmatpush2.msra.mxu0 0.0
  %1980 = vmatprep.subr.mxu0 0.0
  %1981 = vmatpush2.msra.mxu0 0.0
  %1982 = vmatprep.subr.mxu0 0.0
  %1983 = vmatpush2.msra.mxu0 0.0
  %1984 = vmatprep.mubr.f32.mxu0 0.0
  %1985 = vmatmul.mubr.f32.gmra.mxu0 %v1918
  %v1986 = vpop.f32.mrf.mxu0
  %v1987 = vadd.f32 %v1916, %v1986
  %v1988 = vpop.f32.mrf.mxu0
  %1989 = vdwg.mxu0
  %v1990 = vxor.u32 %v1987, 2147483648
  %v1991 = vmul.f32 %v1990, 1.442695
  %v1992 = vpow.pop %v1991
  %v1993 = vadd.f32 %v1992, 1.0
  %v1994 = vrcp.pop %v1993
  %v1995 = vmul.f32 1.0, %v1994
  %v1996 = vtanh.pop %v1987
  %v1997 = vmul.f32 %v1995, %v1672
  %1999 = vrot.lane.b32.xlu0 %v1996, 64
  %v2000 = vpop.permute.xlu0 %1999
  %v2002 = vmul.f32 %v1995, %v2000
  %2004 = vrot.lane.b32.xlu0 %v2002, 32
  %v2005 = vpop.permute.xlu0 %2004
  %v2007 = vadd.f32 %v1997, %v2005
  %v2008 = vtanh.pop %v2007
  %2010 = vrot.lane.b32.xlu0 %v2008, 64
  %v2011 = vpop.permute.xlu0 %2010
  %v2013 = vmul.f32 %v1995, %v2011
  %2015 = vrot.lane.b32.xlu0 %v2013, 32
  %v2016 = vpop.permute.xlu0 %2015
  %v2017 = vsel %vm75, %v2016, 0
  %2019 = vmatprep.subr.mxu0 0.0
  %2020 = vmatpush1.msra.mxu0 0.0
  %2021 = vmatprep.subr.mxu0 0.0
  %2022 = vmatpush1.msra.mxu0 0.0
  %2023 = vmatprep.subr.mxu0 0.0
  %2024 = vmatpush1.msra.mxu0 0.0
  %2025 = vmatprep.subr.mxu0 0.0
  %2026 = vmatpush1.msra.mxu0 0.0
  %2027 = vmatprep.subr.mxu0 0.0
  %2028 = vmatpush1.msra.mxu0 0.0
  %2029 = vmatprep.subr.mxu0 0.0
  %2030 = vmatpush1.msra.mxu0 0.0
  %2031 = vmatprep.subr.mxu0 0.0
  %2032 = vmatpush1.msra.mxu0 0.0
  %2033 = vmatprep.subr.mxu0 0.0
  %2034 = vmatpush1.msra.mxu0 0.0
  %2035 = vmatprep.subr.mxu0 0.0
  %2036 = vmatpush1.msra.mxu0 0.0
  %2037 = vmatprep.subr.mxu0 0.0
  %2038 = vmatpush1.msra.mxu0 0.0
  %2039 = vmatprep.subr.mxu0 0.0
  %2040 = vmatpush1.msra.mxu0 0.0
  %2041 = vmatprep.subr.mxu0 0.0
  %2042 = vmatpush1.msra.mxu0 0.0
  %2043 = vmatprep.subr.mxu0 0.0
  %2044 = vmatpush1.msra.mxu0 %v64
  %2045 = vmatprep.subr.mxu0 0.0
  %2046 = vmatpush1.msra.mxu0 %v63
  %2047 = vmatprep.subr.mxu0 0.0
  %2048 = vmatpush1.msra.mxu0 %v62
  %2049 = vmatprep.subr.mxu0 0.0
  %2050 = vmatpush1.msra.mxu0 %v61
  %2051 = vmatprep.subr.mxu0 0.0
  %2052 = vmatpush2.msra.mxu0 0.0
  %2053 = vmatprep.subr.mxu0 0.0
  %2054 = vmatpush2.msra.mxu0 0.0
  %2055 = vmatprep.subr.mxu0 0.0
  %2056 = vmatpush2.msra.mxu0 0.0
  %2057 = vmatprep.subr.mxu0 0.0
  %2058 = vmatpush2.msra.mxu0 0.0
  %2059 = vmatprep.subr.mxu0 0.0
  %2060 = vmatpush2.msra.mxu0 0.0
  %2061 = vmatprep.subr.mxu0 0.0
  %2062 = vmatpush2.msra.mxu0 0.0
  %2063 = vmatprep.subr.mxu0 0.0
  %2064 = vmatpush2.msra.mxu0 0.0
  %2065 = vmatprep.subr.mxu0 0.0
  %2066 = vmatpush2.msra.mxu0 0.0
  %2067 = vmatprep.subr.mxu0 0.0
  %2068 = vmatpush2.msra.mxu0 0.0
  %2069 = vmatprep.subr.mxu0 0.0
  %2070 = vmatpush2.msra.mxu0 0.0
  %2071 = vmatprep.subr.mxu0 0.0
  %2072 = vmatpush2.msra.mxu0 0.0
  %2073 = vmatprep.subr.mxu0 0.0
  %2074 = vmatpush2.msra.mxu0 0.0
  %2075 = vmatprep.subr.mxu0 0.0
  %2076 = vmatpush2.msra.mxu0 0.0
  %2077 = vmatprep.subr.mxu0 0.0
  %2078 = vmatpush2.msra.mxu0 0.0
  %2079 = vmatprep.subr.mxu0 0.0
  %2080 = vmatpush2.msra.mxu0 0.0
  %2081 = vmatprep.subr.mxu0 0.0
  %2082 = vmatpush2.msra.mxu0 0.0
  %2083 = vmatprep.mubr.f32.mxu0 0.0
  %2084 = vmatmul.mubr.f32.gmra.mxu0 %v2017
  %v2085 = vpop.f32.mrf.mxu0
  %v2086 = vadd.f32 %v335, %v2085
  %v2087 = vpop.f32.mrf.mxu0
  %2088 = vdwg.mxu0
  %2090 = vrot.lane.b32.xlu0 %v2007, 64
  %v2091 = vpop.permute.xlu0 %2090
  %v2093 = vsel %vm229, %v2086, %v2091
  %s2094 = scalar_lea.vmem %s9, 40
  %2095 = vst [vmem:[%s2094] sm:$0xff] %v2093
  // Predicated region
  $region38: #{decoder_decode.1} parent=0 // pred_check
    _
  $region39: #{decoder_decode.1} parent=0 // pred_check_branch
    %2097 = sbr.rel (0) target = $region41
  $region40: #{decoder_decode.1} parent=0 // pred_region
    _
  $region41: #{decoder_decode.1} parent=0 // pred_fallthru
    _
  // Predicated region
  $region42: #{decoder_decode.1} parent=0 // pred_check
    _
  $region43: #{decoder_decode.1} parent=0 // pred_check_branch
    %2099 = sbr.rel (0) target = $region45
  $region44: #{decoder_decode.1} parent=0 // pred_region
    _
  $region45: #{decoder_decode.1} parent=0 // pred_fallthru
    _

</llo_original>
